<compile_context>
chip_gen: v7x
topology: tpu7x:2x2x1
jax: 0.10.0
libtpu: 0.0.40
codegen_flags: <defaults>
</compile_context>

<pallas_src>
import functools
import math

import jax
import jax.numpy as jnp
import numpy as np
from jax.experimental import pallas as pl
from jax.experimental.pallas import tpu as pltpu

PREC = jax.lax.Precision.HIGHEST   # reference only


# ----------------------------------------------------------------------------
# in-kernel helpers
# ----------------------------------------------------------------------------
def _layernorm(x, gamma, beta, eps):
    # TF-style LayerNorm (epsilon inside the sqrt), biased variance.
    u = jnp.mean(x, axis=-1, keepdims=True)
    d = x - u
    s = jnp.mean(d * d, axis=-1, keepdims=True)
    return gamma * (d * jax.lax.rsqrt(s + eps)) + beta


def _gelu(x):
    # tanh approximation: one transcendental on the EUP slot instead of a ~12-op
    # VALU erf polynomial on the [BS, I] intermediate.
    c = math.sqrt(2.0 / math.pi)
    return 0.5 * x * (1.0 + jnp.tanh(c * (x + 0.044715 * x * x * x)))


# ----------------------------------------------------------------------------
# fused BERT kernel: embeddings-LN + L encoder layers + pooler, grid=(nb, L)
# ----------------------------------------------------------------------------
def _bert_kernel(emb_ref, mask_ref, eg_ref, eb_ref,
                 wqkv_ref, bqkv_ref, wo_ref, bo_ref, g1_ref, b1_ref,
                 wi_ref, bi_ref, wf_ref, bf_ref, g2_ref, b2_ref,
                 wp_ref, bp_ref,
                 layers_ref, pooled_ref,
                 h_ref, ctx_ref,
                 *, num_heads, eps):
    l = pl.program_id(1)
    TB, S, H = h_ref.shape
    BS = TB * S
    hd = H // num_heads
    bf16 = jnp.bfloat16

    def dot(a, b):
        # bf16 x bf16 MXU matmul with f32 accumulation.
        return jnp.dot(a.astype(bf16), b, preferred_element_type=jnp.float32)

    # ------------------- step 0: BERTEmbeddings LayerNorm -------------------
    @pl.when(l == 0)
    def _():
        emb = emb_ref[...].reshape(BS, H)          # pre-summed word+pos+type (host gather)
        h_ref[...] = _layernorm(emb, eg_ref[...], eb_ref[...], eps).reshape(TB, S, H)
        pooled_ref[...] = jnp.zeros_like(pooled_ref)

    # ------------------- BERTLayer l -------------------
    x3 = h_ref[...]                                # [TB,S,H]
    x2 = x3.reshape(BS, H)

    # extended attention mask: (1 - mask) * -10000, materialized once per layer
    addmask = jnp.broadcast_to((1.0 - mask_ref[...]) * -10000.0, (TB, S, S))

    # fused QKV projection (1/sqrt(hd) folded into Wq/bq host-side)
    qkv = dot(x2, wqkv_ref[0]) + bqkv_ref[0]       # [BS, 3H] f32
    qkv3 = qkv.reshape(TB, S, 3 * H)

    for hh in range(num_heads):                    # per-head attention (unrolled)
        q = qkv3[:, :, hh * hd:(hh + 1) * hd].astype(bf16)
        k = qkv3[:, :, H + hh * hd:H + (hh + 1) * hd].astype(bf16)
        v = qkv3[:, :, 2 * H + hh * hd:2 * H + (hh + 1) * hd].astype(bf16)
        sc = jnp.einsum('bqd,bkd->bqk', q, k,
                        preferred_element_type=jnp.float32)      # [TB,S,S]
        sc = sc + addmask
        m = jnp.max(sc, axis=-1, keepdims=True)
        p = jnp.exp(sc - m)
        p = p * pl.reciprocal(jnp.sum(p, axis=-1, keepdims=True), approx=True)
        ctx = jnp.einsum('bqk,bkd->bqd', p.astype(bf16), v,
                         preferred_element_type=jnp.float32)     # [TB,S,hd]
        ctx_ref[:, :, hh * hd:(hh + 1) * hd] = ctx               # static lane offsets

    # single full output projection
    attn2 = dot(ctx_ref[...].reshape(BS, H), wo_ref[0]) + bo_ref[0]
    a2 = _layernorm(attn2 + x2, g1_ref[0], b1_ref[0], eps)       # BERTSelfOutput

    inter = _gelu(dot(a2, wi_ref[0]) + bi_ref[0])                # BERTIntermediate
    ffn = dot(inter, wf_ref[0]) + bf_ref[0]                      # BERTOutput
    o2 = _layernorm(ffn + a2, g2_ref[0], b2_ref[0], eps)

    o3 = o2.reshape(TB, S, H)
    h_ref[...] = o3                                              # carry to next layer
    layers_ref[0] = o3                                           # all_encoder_layers[l]

    # ------------------- BERTPooler (after the last layer) -------------------
    @pl.when(l == pl.num_programs(1) - 1)
    def _():
        first = o3[:, 0, :]                                      # [TB,H]
        pooled = jnp.tanh(dot(first, wp_ref[...]) + bp_ref[...])
        pooled_ref[...] = pooled[:, None, :]


# ----------------------------------------------------------------------------
# Wrapper: host-side gather + weight re-layout (bf16) + single pallas_call
# ----------------------------------------------------------------------------
def bert_forward(input_ids, token_type_ids, attention_mask, params, *,
                 num_heads, eps=1e-12, batch_block=1,
                 vmem_limit_bytes=64 * 1024 * 1024):
    f32 = jnp.float32
    bf16 = jnp.bfloat16
    L, H, _ = params['wq'].shape
    nh = num_heads
    assert H % nh == 0
    hd = H // nh
    I = params['wi'].shape[1]
    B, S = input_ids.shape
    TB = batch_block if batch_block is not None else B
    assert B % TB == 0
    nb = B // TB

    # ---- host-side embedding gather (replaces the in-kernel one-hot matmul) ----
    emb_sum = (params['word_emb'][input_ids]
               + params['pos_emb'][:S][None, :, :]
               + params['type_emb'][token_type_ids]).astype(f32)          # [B,S,H]
    mask3 = attention_mask.astype(f32).reshape(B, 1, S)

    # ---- weight re-layout: torch [out,in] -> [in,out], fused QKV, bf16 ----
    scale = 1.0 / math.sqrt(hd)
    wq = jnp.transpose(params['wq'], (0, 2, 1)) * scale    # fold 1/sqrt(hd) into Q
    wk = jnp.transpose(params['wk'], (0, 2, 1))
    wv = jnp.transpose(params['wv'], (0, 2, 1))
    wqkv = jnp.concatenate([wq, wk, wv], axis=-1).astype(bf16)            # [L,H,3H]
    bqkv = jnp.concatenate([params['bq'] * scale, params['bk'], params['bv']],
                           axis=-1).reshape(L, 1, 3 * H).astype(f32)
    wo = jnp.transpose(params['wo'], (0, 2, 1)).astype(bf16)              # [L,H,H]
    bo = params['bo'].reshape(L, 1, H).astype(f32)
    wi = jnp.transpose(params['wi'], (0, 2, 1)).astype(bf16)              # [L,H,I]
    bi = params['bi'].reshape(L, 1, I).astype(f32)
    wf = jnp.transpose(params['wf'], (0, 2, 1)).astype(bf16)              # [L,I,H]
    bf = params['bf'].reshape(L, 1, H).astype(f32)
    g1 = params['ln1_g'].reshape(L, 1, H).astype(f32)
    b1 = params['ln1_b'].reshape(L, 1, H).astype(f32)
    g2 = params['ln2_g'].reshape(L, 1, H).astype(f32)
    b2 = params['ln2_b'].reshape(L, 1, H).astype(f32)
    wp = params['wp'].T.astype(bf16)                                      # [H,H]
    bp = params['bp'].reshape(1, H).astype(f32)
    eg = params['emb_gamma'].reshape(1, H).astype(f32)
    eb = params['emb_beta'].reshape(1, H).astype(f32)

    batch3 = lambda b, l: (b, 0, 0)
    const2 = lambda b, l: (0, 0)
    perl3 = lambda b, l: (l, 0, 0)

    in_specs = [
        pl.BlockSpec((TB, S, H), batch3),            # pre-summed embeddings
        pl.BlockSpec((TB, 1, S), batch3),            # attention mask (f32 0/1)
        pl.BlockSpec((1, H), const2),                # emb LN gamma
        pl.BlockSpec((1, H), const2),                # emb LN beta
        pl.BlockSpec((1, H, 3 * H), perl3),          # fused Wqkv (bf16)
        pl.BlockSpec((1, 1, 3 * H), perl3),          # fused bqkv
        pl.BlockSpec((1, H, H), perl3),              # Wo (bf16)
        pl.BlockSpec((1, 1, H), perl3),              # bo
        pl.BlockSpec((1, 1, H), perl3),              # LN1 gamma
        pl.BlockSpec((1, 1, H), perl3),              # LN1 beta
        pl.BlockSpec((1, H, I), perl3),              # Wi (bf16)
        pl.BlockSpec((1, 1, I), perl3),              # bi
        pl.BlockSpec((1, I, H), perl3),              # Wf (bf16)
        pl.BlockSpec((1, 1, H), perl3),              # bf
        pl.BlockSpec((1, 1, H), perl3),              # LN2 gamma
        pl.BlockSpec((1, 1, H), perl3),              # LN2 beta
        pl.BlockSpec((H, H), const2),                # pooler W (bf16)
        pl.BlockSpec((1, H), const2),                # pooler b
    ]
    out_specs = (
        pl.BlockSpec((1, TB, S, H), lambda b, l: (l, b, 0, 0)),   # all_encoder_layers
        pl.BlockSpec((TB, 1, H), batch3),                         # pooled (resident over l)
    )
    out_shape = (jax.ShapeDtypeStruct((L, B, S, H), f32),
                 jax.ShapeDtypeStruct((B, 1, H), f32))

    kernel = functools.partial(_bert_kernel, num_heads=num_heads, eps=eps)
    layers, pooled = pl.pallas_call(
        kernel,
        grid=(nb, L),
        in_specs=in_specs,
        out_specs=out_specs,
        out_shape=out_shape,
        scratch_shapes=[pltpu.VMEM((TB, S, H), f32),   # hidden-state carry
                        pltpu.VMEM((TB, S, H), f32)],  # per-head ctx staging buffer
        compiler_params=pltpu.CompilerParams(
            dimension_semantics=("parallel", "arbitrary"),
            vmem_limit_bytes=vmem_limit_bytes),
    )(emb_sum, mask3, eg, eb,
      wqkv, bqkv, wo, bo, g1, b1,
      wi, bi, wf, bf, g2, b2,
      wp, bp)
    return layers, pooled.reshape(B, H)


# ----------------------------------------------------------------------------
# Pure-JAX reference (mirrors the torch module, f32, exact erf)
# ----------------------------------------------------------------------------
def bert_ref(input_ids, token_type_ids, attention_mask, params, *,
             num_heads, eps=1e-12):
    f32 = jnp.float32
    B, S = input_ids.shape
    L, H, _ = params['wq'].shape
    hd = H // num_heads

    def ln(x, g, b):
        u = x.mean(-1, keepdims=True)
        s = ((x - u) ** 2).mean(-1, keepdims=True)
        return g * ((x - u) / jnp.sqrt(s + eps)) + b

    def gelu(x):
        return x * 0.5 * (1.0 + jax.lax.erf(x / math.sqrt(2.0)))

    ext = (1.0 - attention_mask.astype(f32))[:, None, None, :] * -10000.0

    we = params['word_emb'][input_ids]
    pe = params['pos_emb'][jnp.arange(S)][None, :, :]
    te = params['type_emb'][token_type_ids]
    h = ln(we + pe + te, params['emb_gamma'], params['emb_beta'])

    def split(t):
        return t.reshape(B, S, num_heads, hd).transpose(0, 2, 1, 3)

    layers = []
    for l in range(L):
        q = jnp.matmul(h, params['wq'][l].T, precision=PREC) + params['bq'][l]
        k = jnp.matmul(h, params['wk'][l].T, precision=PREC) + params['bk'][l]
        v = jnp.matmul(h, params['wv'][l].T, precision=PREC) + params['bv'][l]
        qh, kh, vh = split(q), split(k), split(v)
        sc = jnp.einsum('bnqd,bnkd->bnqk', qh, kh, precision=PREC) / math.sqrt(hd)
        sc = sc + ext
        p = jax.nn.softmax(sc, axis=-1)
        ctx = jnp.einsum('bnqk,bnkd->bnqd', p, vh, precision=PREC)
        ctx = ctx.transpose(0, 2, 1, 3).reshape(B, S, H)
        attn = jnp.matmul(ctx, params['wo'][l].T, precision=PREC) + params['bo'][l]
        a = ln(attn + h, params['ln1_g'][l], params['ln1_b'][l])
        inter = gelu(jnp.matmul(a, params['wi'][l].T, precision=PREC) + params['bi'][l])
        ffn = jnp.matmul(inter, params['wf'][l].T, precision=PREC) + params['bf'][l]
        h = ln(ffn + a, params['ln2_g'][l], params['ln2_b'][l])
        layers.append(h)
    pooled = jnp.tanh(jnp.matmul(h[:, 0, :], params['wp'].T, precision=PREC)
                      + params['bp'])
    return jnp.stack(layers, axis=0), pooled


# ----------------------------------------------------------------------------
# Parameter init (torch-style layouts: Linear W is [out,in], b is [out])
# ----------------------------------------------------------------------------
def init_params(key, *, V, P, T, H, I, L):
    keys = iter(jax.random.split(key, 32))
    f32 = jnp.float32

    def emb(shape):
        return 0.02 * jax.random.normal(next(keys), shape, f32)

    def linear(fan_out, fan_in, stack=None):
        bound = 1.0 / math.sqrt(fan_in)
        w_shape = (fan_out, fan_in) if stack is None else (stack, fan_out, fan_in)
        b_shape = (fan_out,) if stack is None else (stack, fan_out)
        w = jax.random.uniform(next(keys), w_shape, f32, -bound, bound)
        b = jax.random.uniform(next(keys), b_shape, f32, -bound, bound)
        return w, b

    p = {}
    p['word_emb'] = emb((V, H))
    p['pos_emb'] = emb((P, H))
    p['type_emb'] = emb((T, H))
    p['emb_gamma'] = jnp.ones((H,), f32)
    p['emb_beta'] = jnp.zeros((H,), f32)
    p['wq'], p['bq'] = linear(H, H, L)
    p['wk'], p['bk'] = linear(H, H, L)
    p['wv'], p['bv'] = linear(H, H, L)
    p['wo'], p['bo'] = linear(H, H, L)
    p['ln1_g'] = jnp.ones((L, H), f32)
    p['ln1_b'] = jnp.zeros((L, H), f32)
    p['wi'], p['bi'] = linear(I, H, L)
    p['wf'], p['bf'] = linear(H, I, L)
    p['ln2_g'] = jnp.ones((L, H), f32)
    p['ln2_b'] = jnp.zeros((L, H), f32)
    p['wp'], p['bp'] = linear(H, H)
    return p


# ----------------------------------------------------------------------------
# Main
# ----------------------------------------------------------------------------
if __name__ == "__main__":
    B, S = 2, 8                 # batch, sequence length
    H, NH, I, L = 32, 4, 64, 2  # hidden, heads, intermediate, layers
    V, P, T = 64, 64, 2         # vocab, max positions, type vocab

    key = jax.random.PRNGKey(0)
    k_ids, k_tok, k_par = jax.random.split(key, 3)

    input_ids = jax.random.randint(k_ids, (B, S), 0, V, dtype=jnp.int32)
    token_type_ids = jax.random.randint(k_tok, (B, S), 0, T, dtype=jnp.int32)
    attention_mask = jnp.array([[1] * S, [1] * (S - 2) + [0] * 2], dtype=jnp.int32)

    params = init_params(k_par, V=V, P=P, T=T, H=H, I=I, L=L)

    fwd = jax.jit(functools.partial(bert_forward, num_heads=NH, eps=1e-12,
                                    batch_block=1))
    layers, pooled = fwd(input_ids, token_type_ids, attention_mask, params)
    jax.block_until_ready((layers, pooled))

    layers_ref, pooled_ref = bert_ref(input_ids, token_type_ids, attention_mask,
                                      params, num_heads=NH, eps=1e-12)

    assert layers.shape == (L, B, S, H)
    assert pooled.shape == (B, H)
    # bf16 matmuls (f32 accumulation) + tanh-GELU + approx reciprocal -> looser tolerance.
    np.testing.assert_allclose(np.asarray(layers), np.asarray(layers_ref),
                               rtol=3e-2, atol=3e-2)
    np.testing.assert_allclose(np.asarray(pooled), np.asarray(pooled_ref),
                               rtol=3e-2, atol=3e-2)

    print("KERNEL_OK")
</pallas_src>

<mosaic_0001>
module attributes {stable_mosaic.version = 11 : i64} {
  func.func @_bert_kernel(%arg0: i32, %arg1: i32, %arg2: memref<1x8x32xf32, #tpu.memory_space<vmem>>, %arg3: memref<1x1x8xf32, #tpu.memory_space<vmem>>, %arg4: memref<1x32xf32, #tpu.memory_space<vmem>>, %arg5: memref<1x32xf32, #tpu.memory_space<vmem>>, %arg6: memref<1x32x96xbf16, #tpu.memory_space<vmem>>, %arg7: memref<1x1x96xf32, #tpu.memory_space<vmem>>, %arg8: memref<1x32x32xbf16, #tpu.memory_space<vmem>>, %arg9: memref<1x1x32xf32, #tpu.memory_space<vmem>>, %arg10: memref<1x1x32xf32, #tpu.memory_space<vmem>>, %arg11: memref<1x1x32xf32, #tpu.memory_space<vmem>>, %arg12: memref<1x32x64xbf16, #tpu.memory_space<vmem>>, %arg13: memref<1x1x64xf32, #tpu.memory_space<vmem>>, %arg14: memref<1x64x32xbf16, #tpu.memory_space<vmem>>, %arg15: memref<1x1x32xf32, #tpu.memory_space<vmem>>, %arg16: memref<1x1x32xf32, #tpu.memory_space<vmem>>, %arg17: memref<1x1x32xf32, #tpu.memory_space<vmem>>, %arg18: memref<32x32xbf16, #tpu.memory_space<vmem>>, %arg19: memref<1x32xf32, #tpu.memory_space<vmem>>, %arg20: memref<1x1x8x32xf32, #tpu.memory_space<vmem>>, %arg21: memref<1x1x32xf32, #tpu.memory_space<vmem>>, %arg22: memref<1x8x32xf32, #tpu.memory_space<vmem>>, %arg23: memref<1x8x32xf32, #tpu.memory_space<vmem>>) attributes {dimension_semantics = [#tpu.dimension_semantics<parallel>, #tpu.dimension_semantics<arbitrary>], iteration_bounds = array<i64: 2, 2>, scalar_prefetch = 0 : i64, scratch_operands = 2 : i64, tpu.core_type = #tpu.core_type<tc>, window_params = [{transform_indices = @transform_0, window_bounds = array<i64: 1, 8, 32>}, {transform_indices = @transform_1, window_bounds = array<i64: 1, 1, 8>}, {pipeline_mode = #tpu.pipeline_mode<synchronous>, transform_indices = @transform_2, window_bounds = array<i64: 1, 32>}, {pipeline_mode = #tpu.pipeline_mode<synchronous>, transform_indices = @transform_3, window_bounds = array<i64: 1, 32>}, {transform_indices = @transform_4, window_bounds = array<i64: 1, 32, 96>}, {transform_indices = @transform_5, window_bounds = array<i64: 1, 1, 96>}, {transform_indices = @transform_6, window_bounds = array<i64: 1, 32, 32>}, {transform_indices = @transform_7, window_bounds = array<i64: 1, 1, 32>}, {transform_indices = @transform_8, window_bounds = array<i64: 1, 1, 32>}, {transform_indices = @transform_9, window_bounds = array<i64: 1, 1, 32>}, {transform_indices = @transform_10, window_bounds = array<i64: 1, 32, 64>}, {transform_indices = @transform_11, window_bounds = array<i64: 1, 1, 64>}, {transform_indices = @transform_12, window_bounds = array<i64: 1, 64, 32>}, {transform_indices = @transform_13, window_bounds = array<i64: 1, 1, 32>}, {transform_indices = @transform_14, window_bounds = array<i64: 1, 1, 32>}, {transform_indices = @transform_15, window_bounds = array<i64: 1, 1, 32>}, {pipeline_mode = #tpu.pipeline_mode<synchronous>, transform_indices = @transform_16, window_bounds = array<i64: 32, 32>}, {pipeline_mode = #tpu.pipeline_mode<synchronous>, transform_indices = @transform_17, window_bounds = array<i64: 1, 32>}, {transform_indices = @transform_18, window_bounds = array<i64: 1, 1, 8, 32>}, {transform_indices = @transform_19, window_bounds = array<i64: 1, 1, 32>}]} {
    %c0_i32 = arith.constant 0 : i32
    %0 = arith.cmpi eq, %arg1, %c0_i32 : i32
    %1 = arith.extui %0 : i1 to i32
    %c0_i32_0 = arith.constant 0 : i32
    %2 = arith.cmpi ne, %1, %c0_i32_0 : i32
    scf.if %2 {
      %c0_97 = arith.constant 0 : index
      %c0_98 = arith.constant 0 : index
      %c0_99 = arith.constant 0 : index
      %202 = vector.load %arg2[%c0_97, %c0_98, %c0_99] : memref<1x8x32xf32, #tpu.memory_space<vmem>>, vector<1x8x32xf32>
      %203 = vector.shape_cast %202 : vector<1x8x32xf32> to vector<8x32xf32>
      %c0_100 = arith.constant 0 : index
      %c0_101 = arith.constant 0 : index
      %204 = vector.load %arg4[%c0_100, %c0_101] : memref<1x32xf32, #tpu.memory_space<vmem>>, vector<1x32xf32>
      %c0_102 = arith.constant 0 : index
      %c0_103 = arith.constant 0 : index
      %205 = vector.load %arg5[%c0_102, %c0_103] : memref<1x32xf32, #tpu.memory_space<vmem>>, vector<1x32xf32>
      %cst_104 = arith.constant dense<0.000000e+00> : vector<8xf32>
      %206 = vector.multi_reduction <add>, %203, %cst_104 [1] : vector<8x32xf32> to vector<8xf32>
      %207 = vector.shape_cast %206 : vector<8xf32> to vector<8x1xf32>
      %cst_105 = arith.constant 3.200000e+01 : f32
      %208 = vector.broadcast %cst_105 : f32 to vector<8x1xf32>
      %209 = arith.divf %207, %208 : vector<8x1xf32>
      %210 = vector.broadcast %209 : vector<8x1xf32> to vector<8x32xf32>
      %211 = arith.subf %203, %210 : vector<8x32xf32>
      %212 = arith.mulf %211, %211 : vector<8x32xf32>
      %cst_106 = arith.constant dense<0.000000e+00> : vector<8xf32>
      %213 = vector.multi_reduction <add>, %212, %cst_106 [1] : vector<8x32xf32> to vector<8xf32>
      %214 = vector.shape_cast %213 : vector<8xf32> to vector<8x1xf32>
      %cst_107 = arith.constant 3.200000e+01 : f32
      %215 = vector.broadcast %cst_107 : f32 to vector<8x1xf32>
      %216 = arith.divf %214, %215 : vector<8x1xf32>
      %cst_108 = arith.constant 9.99999996E-13 : f32
      %217 = vector.broadcast %cst_108 : f32 to vector<8x1xf32>
      %218 = arith.addf %216, %217 : vector<8x1xf32>
      %219 = math.rsqrt %218 : vector<8x1xf32>
      %220 = vector.broadcast %219 : vector<8x1xf32> to vector<8x32xf32>
      %221 = arith.mulf %211, %220 : vector<8x32xf32>
      %222 = vector.broadcast %204 : vector<1x32xf32> to vector<8x32xf32>
      %223 = arith.mulf %222, %221 : vector<8x32xf32>
      %224 = vector.broadcast %205 : vector<1x32xf32> to vector<8x32xf32>
      %225 = arith.addf %223, %224 : vector<8x32xf32>
      %226 = vector.shape_cast %225 : vector<8x32xf32> to vector<1x8x32xf32>
      %c0_109 = arith.constant 0 : index
      %c0_110 = arith.constant 0 : index
      %c0_111 = arith.constant 0 : index
      %227 = vector.load %arg22[%c0_109, %c0_110, %c0_111] : memref<1x8x32xf32, #tpu.memory_space<vmem>>, vector<1x8x32xf32>
      tpu.vector_store %arg22[%c0_109, %c0_110, %c0_111], %226 {strides = array<i32>} : memref<1x8x32xf32, #tpu.memory_space<vmem>>, vector<1x8x32xf32>,
      %cst_112 = arith.constant 0.000000e+00 : f32
      %228 = vector.broadcast %cst_112 : f32 to vector<1x1x32xf32>
      %c0_113 = arith.constant 0 : index
      %c0_114 = arith.constant 0 : index
      %c0_115 = arith.constant 0 : index
      %229 = vector.load %arg21[%c0_113, %c0_114, %c0_115] : memref<1x1x32xf32, #tpu.memory_space<vmem>>, vector<1x1x32xf32>
      tpu.vector_store %arg21[%c0_113, %c0_114, %c0_115], %228 {strides = array<i32>} : memref<1x1x32xf32, #tpu.memory_space<vmem>>, vector<1x1x32xf32>,
    } else {
    }
    %c0 = arith.constant 0 : index
    %c0_1 = arith.constant 0 : index
    %c0_2 = arith.constant 0 : index
    %3 = vector.load %arg22[%c0, %c0_1, %c0_2] : memref<1x8x32xf32, #tpu.memory_space<vmem>>, vector<1x8x32xf32>
    %4 = vector.shape_cast %3 : vector<1x8x32xf32> to vector<8x32xf32>
    %c0_3 = arith.constant 0 : index
    %c0_4 = arith.constant 0 : index
    %c0_5 = arith.constant 0 : index
    %5 = vector.load %arg3[%c0_3, %c0_4, %c0_5] : memref<1x1x8xf32, #tpu.memory_space<vmem>>, vector<1x1x8xf32>
    %cst = arith.constant 1.000000e+00 : f32
    %6 = vector.broadcast %cst : f32 to vector<1x1x8xf32>
    %7 = arith.subf %6, %5 : vector<1x1x8xf32>
    %cst_6 = arith.constant -1.000000e+04 : f32
    %8 = vector.broadcast %cst_6 : f32 to vector<1x1x8xf32>
    %9 = arith.mulf %7, %8 : vector<1x1x8xf32>
    %10 = vector.shape_cast %9 : vector<1x1x8xf32> to vector<1x1x8xf32>
    %11 = vector.broadcast %10 : vector<1x1x8xf32> to vector<1x8x8xf32>
    %c0_7 = arith.constant 0 : index
    %c0_8 = arith.constant 0 : index
    %c0_9 = arith.constant 0 : index
    %12 = vector.load %arg6[%c0_7, %c0_8, %c0_9] : memref<1x32x96xbf16, #tpu.memory_space<vmem>>, vector<1x32x96xbf16>
    %13 = vector.shape_cast %12 : vector<1x32x96xbf16> to vector<32x96xbf16>
    %14 = arith.truncf %4 : vector<8x32xf32> to vector<8x32xbf16>
    %cst_10 = arith.constant dense<0.000000e+00> : vector<8x96xf32>
    %15 = tpu.matmul %14, %13, %cst_10 {dimension_numbers = #tpu.dot_dimension_numbers<[1], [0], [0], [1], [0, 0, 1, 1], [], []>} : vector<8x32xbf16>, vector<32x96xbf16>, vector<8x96xf32> -> vector<8x96xf32>
    %c0_11 = arith.constant 0 : index
    %c0_12 = arith.constant 0 : index
    %c0_13 = arith.constant 0 : index
    %16 = vector.load %arg7[%c0_11, %c0_12, %c0_13] : memref<1x1x96xf32, #tpu.memory_space<vmem>>, vector<1x1x96xf32>
    %17 = vector.shape_cast %16 : vector<1x1x96xf32> to vector<1x96xf32>
    %18 = vector.broadcast %17 : vector<1x96xf32> to vector<8x96xf32>
    %19 = arith.addf %15, %18 : vector<8x96xf32>
    %20 = vector.shape_cast %19 : vector<8x96xf32> to vector<1x8x96xf32>
    %21 = vector.extract_strided_slice %20 {offsets = [0, 0, 0], sizes = [1, 8, 8], strides = [1, 1, 1]} : vector<1x8x96xf32> to vector<1x8x8xf32>
    %22 = arith.truncf %21 : vector<1x8x8xf32> to vector<1x8x8xbf16>
    %23 = vector.extract_strided_slice %20 {offsets = [0, 0, 32], sizes = [1, 8, 8], strides = [1, 1, 1]} : vector<1x8x96xf32> to vector<1x8x8xf32>
    %24 = arith.truncf %23 : vector<1x8x8xf32> to vector<1x8x8xbf16>
    %25 = vector.extract_strided_slice %20 {offsets = [0, 0, 64], sizes = [1, 8, 8], strides = [1, 1, 1]} : vector<1x8x96xf32> to vector<1x8x8xf32>
    %26 = arith.truncf %25 : vector<1x8x8xf32> to vector<1x8x8xbf16>
    "tpu.trace_start"() <{level = 10 : i32, message = "bqd,bkd->bqk"}> : () -> ()
    %cst_14 = arith.constant dense<0.000000e+00> : vector<1x8x8xf32>
    %27 = tpu.matmul %22, %24, %cst_14 {dimension_numbers = #tpu.dot_dimension_numbers<[2], [2], [1], [1], [0, 0, 0, 1, 1, 1], [0], [0]>} : vector<1x8x8xbf16>, vector<1x8x8xbf16>, vector<1x8x8xf32> -> vector<1x8x8xf32>
    "tpu.trace_stop"() : () -> ()
    %28 = arith.addf %27, %11 : vector<1x8x8xf32>
    %cst_15 = arith.constant dense<0xFF800000> : vector<1x8xf32>
    %29 = vector.multi_reduction <maximumf>, %28, %cst_15 [2] : vector<1x8x8xf32> to vector<1x8xf32>
    %30 = vector.shape_cast %29 : vector<1x8xf32> to vector<1x8x1xf32>
    %31 = vector.broadcast %30 : vector<1x8x1xf32> to vector<1x8x8xf32>
    %32 = arith.subf %28, %31 : vector<1x8x8xf32>
    %33 = math.exp %32 : vector<1x8x8xf32>
    %cst_16 = arith.constant dense<0.000000e+00> : vector<1x8xf32>
    %34 = vector.multi_reduction <add>, %33, %cst_16 [2] : vector<1x8x8xf32> to vector<1x8xf32>
    %35 = vector.shape_cast %34 : vector<1x8xf32> to vector<1x8x1xf32>
    %36 = tpu.reciprocal %35 {approx = true} : vector<1x8x1xf32> -> vector<1x8x1xf32>
    %37 = vector.broadcast %36 : vector<1x8x1xf32> to vector<1x8x8xf32>
    %38 = arith.mulf %33, %37 : vector<1x8x8xf32>
    %39 = arith.truncf %38 : vector<1x8x8xf32> to vector<1x8x8xbf16>
    "tpu.trace_start"() <{level = 10 : i32, message = "bqk,bkd->bqd"}> : () -> ()
    %cst_17 = arith.constant dense<0.000000e+00> : vector<1x8x8xf32>
    %40 = tpu.matmul %39, %26, %cst_17 {dimension_numbers = #tpu.dot_dimension_numbers<[2], [1], [1], [2], [0, 0, 0, 1, 1, 2], [0], [0]>} : vector<1x8x8xbf16>, vector<1x8x8xbf16>, vector<1x8x8xf32> -> vector<1x8x8xf32>
    "tpu.trace_stop"() : () -> ()
    %c0_18 = arith.constant 0 : index
    %c0_19 = arith.constant 0 : index
    %c0_20 = arith.constant 0 : index
    %41 = vector.load %arg23[%c0_18, %c0_19, %c0_20] : memref<1x8x32xf32, #tpu.memory_space<vmem>>, vector<1x8x8xf32>
    tpu.vector_store %arg23[%c0_18, %c0_19, %c0_20], %40 {strides = array<i32>} : memref<1x8x32xf32, #tpu.memory_space<vmem>>, vector<1x8x8xf32>,
    %42 = vector.extract_strided_slice %20 {offsets = [0, 0, 8], sizes = [1, 8, 8], strides = [1, 1, 1]} : vector<1x8x96xf32> to vector<1x8x8xf32>
    %43 = arith.truncf %42 : vector<1x8x8xf32> to vector<1x8x8xbf16>
    %44 = vector.extract_strided_slice %20 {offsets = [0, 0, 40], sizes = [1, 8, 8], strides = [1, 1, 1]} : vector<1x8x96xf32> to vector<1x8x8xf32>
    %45 = arith.truncf %44 : vector<1x8x8xf32> to vector<1x8x8xbf16>
    %46 = vector.extract_strided_slice %20 {offsets = [0, 0, 72], sizes = [1, 8, 8], strides = [1, 1, 1]} : vector<1x8x96xf32> to vector<1x8x8xf32>
    %47 = arith.truncf %46 : vector<1x8x8xf32> to vector<1x8x8xbf16>
    "tpu.trace_start"() <{level = 10 : i32, message = "bqd,bkd->bqk"}> : () -> ()
    %cst_21 = arith.constant dense<0.000000e+00> : vector<1x8x8xf32>
    %48 = tpu.matmul %43, %45, %cst_21 {dimension_numbers = #tpu.dot_dimension_numbers<[2], [2], [1], [1], [0, 0, 0, 1, 1, 1], [0], [0]>} : vector<1x8x8xbf16>, vector<1x8x8xbf16>, vector<1x8x8xf32> -> vector<1x8x8xf32>
    "tpu.trace_stop"() : () -> ()
    %49 = arith.addf %48, %11 : vector<1x8x8xf32>
    %cst_22 = arith.constant dense<0xFF800000> : vector<1x8xf32>
    %50 = vector.multi_reduction <maximumf>, %49, %cst_22 [2] : vector<1x8x8xf32> to vector<1x8xf32>
    %51 = vector.shape_cast %50 : vector<1x8xf32> to vector<1x8x1xf32>
    %52 = vector.broadcast %51 : vector<1x8x1xf32> to vector<1x8x8xf32>
    %53 = arith.subf %49, %52 : vector<1x8x8xf32>
    %54 = math.exp %53 : vector<1x8x8xf32>
    %cst_23 = arith.constant dense<0.000000e+00> : vector<1x8xf32>
    %55 = vector.multi_reduction <add>, %54, %cst_23 [2] : vector<1x8x8xf32> to vector<1x8xf32>
    %56 = vector.shape_cast %55 : vector<1x8xf32> to vector<1x8x1xf32>
    %57 = tpu.reciprocal %56 {approx = true} : vector<1x8x1xf32> -> vector<1x8x1xf32>
    %58 = vector.broadcast %57 : vector<1x8x1xf32> to vector<1x8x8xf32>
    %59 = arith.mulf %54, %58 : vector<1x8x8xf32>
    %60 = arith.truncf %59 : vector<1x8x8xf32> to vector<1x8x8xbf16>
    "tpu.trace_start"() <{level = 10 : i32, message = "bqk,bkd->bqd"}> : () -> ()
    %cst_24 = arith.constant dense<0.000000e+00> : vector<1x8x8xf32>
    %61 = tpu.matmul %60, %47, %cst_24 {dimension_numbers = #tpu.dot_dimension_numbers<[2], [1], [1], [2], [0, 0, 0, 1, 1, 2], [0], [0]>} : vector<1x8x8xbf16>, vector<1x8x8xbf16>, vector<1x8x8xf32> -> vector<1x8x8xf32>
    "tpu.trace_stop"() : () -> ()
    %c0_25 = arith.constant 0 : index
    %c0_26 = arith.constant 0 : index
    %c8 = arith.constant 8 : index
    %62 = vector.load %arg23[%c0_25, %c0_26, %c8] : memref<1x8x32xf32, #tpu.memory_space<vmem>>, vector<1x8x8xf32>
    tpu.vector_store %arg23[%c0_25, %c0_26, %c8], %61 {strides = array<i32>} : memref<1x8x32xf32, #tpu.memory_space<vmem>>, vector<1x8x8xf32>,
    %63 = vector.extract_strided_slice %20 {offsets = [0, 0, 16], sizes = [1, 8, 8], strides = [1, 1, 1]} : vector<1x8x96xf32> to vector<1x8x8xf32>
    %64 = arith.truncf %63 : vector<1x8x8xf32> to vector<1x8x8xbf16>
    %65 = vector.extract_strided_slice %20 {offsets = [0, 0, 48], sizes = [1, 8, 8], strides = [1, 1, 1]} : vector<1x8x96xf32> to vector<1x8x8xf32>
    %66 = arith.truncf %65 : vector<1x8x8xf32> to vector<1x8x8xbf16>
    %67 = vector.extract_strided_slice %20 {offsets = [0, 0, 80], sizes = [1, 8, 8], strides = [1, 1, 1]} : vector<1x8x96xf32> to vector<1x8x8xf32>
    %68 = arith.truncf %67 : vector<1x8x8xf32> to vector<1x8x8xbf16>
    "tpu.trace_start"() <{level = 10 : i32, message = "bqd,bkd->bqk"}> : () -> ()
    %cst_27 = arith.constant dense<0.000000e+00> : vector<1x8x8xf32>
    %69 = tpu.matmul %64, %66, %cst_27 {dimension_numbers = #tpu.dot_dimension_numbers<[2], [2], [1], [1], [0, 0, 0, 1, 1, 1], [0], [0]>} : vector<1x8x8xbf16>, vector<1x8x8xbf16>, vector<1x8x8xf32> -> vector<1x8x8xf32>
    "tpu.trace_stop"() : () -> ()
    %70 = arith.addf %69, %11 : vector<1x8x8xf32>
    %cst_28 = arith.constant dense<0xFF800000> : vector<1x8xf32>
    %71 = vector.multi_reduction <maximumf>, %70, %cst_28 [2] : vector<1x8x8xf32> to vector<1x8xf32>
    %72 = vector.shape_cast %71 : vector<1x8xf32> to vector<1x8x1xf32>
    %73 = vector.broadcast %72 : vector<1x8x1xf32> to vector<1x8x8xf32>
    %74 = arith.subf %70, %73 : vector<1x8x8xf32>
    %75 = math.exp %74 : vector<1x8x8xf32>
    %cst_29 = arith.constant dense<0.000000e+00> : vector<1x8xf32>
    %76 = vector.multi_reduction <add>, %75, %cst_29 [2] : vector<1x8x8xf32> to vector<1x8xf32>
    %77 = vector.shape_cast %76 : vector<1x8xf32> to vector<1x8x1xf32>
    %78 = tpu.reciprocal %77 {approx = true} : vector<1x8x1xf32> -> vector<1x8x1xf32>
    %79 = vector.broadcast %78 : vector<1x8x1xf32> to vector<1x8x8xf32>
    %80 = arith.mulf %75, %79 : vector<1x8x8xf32>
    %81 = arith.truncf %80 : vector<1x8x8xf32> to vector<1x8x8xbf16>
    "tpu.trace_start"() <{level = 10 : i32, message = "bqk,bkd->bqd"}> : () -> ()
    %cst_30 = arith.constant dense<0.000000e+00> : vector<1x8x8xf32>
    %82 = tpu.matmul %81, %68, %cst_30 {dimension_numbers = #tpu.dot_dimension_numbers<[2], [1], [1], [2], [0, 0, 0, 1, 1, 2], [0], [0]>} : vector<1x8x8xbf16>, vector<1x8x8xbf16>, vector<1x8x8xf32> -> vector<1x8x8xf32>
    "tpu.trace_stop"() : () -> ()
    %c0_31 = arith.constant 0 : index
    %c0_32 = arith.constant 0 : index
    %c16 = arith.constant 16 : index
    %83 = vector.load %arg23[%c0_31, %c0_32, %c16] : memref<1x8x32xf32, #tpu.memory_space<vmem>>, vector<1x8x8xf32>
    tpu.vector_store %arg23[%c0_31, %c0_32, %c16], %82 {strides = array<i32>} : memref<1x8x32xf32, #tpu.memory_space<vmem>>, vector<1x8x8xf32>,
    %84 = vector.extract_strided_slice %20 {offsets = [0, 0, 24], sizes = [1, 8, 8], strides = [1, 1, 1]} : vector<1x8x96xf32> to vector<1x8x8xf32>
    %85 = arith.truncf %84 : vector<1x8x8xf32> to vector<1x8x8xbf16>
    %86 = vector.extract_strided_slice %20 {offsets = [0, 0, 56], sizes = [1, 8, 8], strides = [1, 1, 1]} : vector<1x8x96xf32> to vector<1x8x8xf32>
    %87 = arith.truncf %86 : vector<1x8x8xf32> to vector<1x8x8xbf16>
    %88 = vector.extract_strided_slice %20 {offsets = [0, 0, 88], sizes = [1, 8, 8], strides = [1, 1, 1]} : vector<1x8x96xf32> to vector<1x8x8xf32>
    %89 = arith.truncf %88 : vector<1x8x8xf32> to vector<1x8x8xbf16>
    "tpu.trace_start"() <{level = 10 : i32, message = "bqd,bkd->bqk"}> : () -> ()
    %cst_33 = arith.constant dense<0.000000e+00> : vector<1x8x8xf32>
    %90 = tpu.matmul %85, %87, %cst_33 {dimension_numbers = #tpu.dot_dimension_numbers<[2], [2], [1], [1], [0, 0, 0, 1, 1, 1], [0], [0]>} : vector<1x8x8xbf16>, vector<1x8x8xbf16>, vector<1x8x8xf32> -> vector<1x8x8xf32>
    "tpu.trace_stop"() : () -> ()
    %91 = arith.addf %90, %11 : vector<1x8x8xf32>
    %cst_34 = arith.constant dense<0xFF800000> : vector<1x8xf32>
    %92 = vector.multi_reduction <maximumf>, %91, %cst_34 [2] : vector<1x8x8xf32> to vector<1x8xf32>
    %93 = vector.shape_cast %92 : vector<1x8xf32> to vector<1x8x1xf32>
    %94 = vector.broadcast %93 : vector<1x8x1xf32> to vector<1x8x8xf32>
    %95 = arith.subf %91, %94 : vector<1x8x8xf32>
    %96 = math.exp %95 : vector<1x8x8xf32>
    %cst_35 = arith.constant dense<0.000000e+00> : vector<1x8xf32>
    %97 = vector.multi_reduction <add>, %96, %cst_35 [2] : vector<1x8x8xf32> to vector<1x8xf32>
    %98 = vector.shape_cast %97 : vector<1x8xf32> to vector<1x8x1xf32>
    %99 = tpu.reciprocal %98 {approx = true} : vector<1x8x1xf32> -> vector<1x8x1xf32>
    %100 = vector.broadcast %99 : vector<1x8x1xf32> to vector<1x8x8xf32>
    %101 = arith.mulf %96, %100 : vector<1x8x8xf32>
    %102 = arith.truncf %101 : vector<1x8x8xf32> to vector<1x8x8xbf16>
    "tpu.trace_start"() <{level = 10 : i32, message = "bqk,bkd->bqd"}> : () -> ()
    %cst_36 = arith.constant dense<0.000000e+00> : vector<1x8x8xf32>
    %103 = tpu.matmul %102, %89, %cst_36 {dimension_numbers = #tpu.dot_dimension_numbers<[2], [1], [1], [2], [0, 0, 0, 1, 1, 2], [0], [0]>} : vector<1x8x8xbf16>, vector<1x8x8xbf16>, vector<1x8x8xf32> -> vector<1x8x8xf32>
    "tpu.trace_stop"() : () -> ()
    %c0_37 = arith.constant 0 : index
    %c0_38 = arith.constant 0 : index
    %c24 = arith.constant 24 : index
    %104 = vector.load %arg23[%c0_37, %c0_38, %c24] : memref<1x8x32xf32, #tpu.memory_space<vmem>>, vector<1x8x8xf32>
    tpu.vector_store %arg23[%c0_37, %c0_38, %c24], %103 {strides = array<i32>} : memref<1x8x32xf32, #tpu.memory_space<vmem>>, vector<1x8x8xf32>,
    %c0_39 = arith.constant 0 : index
    %c0_40 = arith.constant 0 : index
    %c0_41 = arith.constant 0 : index
    %105 = vector.load %arg23[%c0_39, %c0_40, %c0_41] : memref<1x8x32xf32, #tpu.memory_space<vmem>>, vector<1x8x32xf32>
    %106 = vector.shape_cast %105 : vector<1x8x32xf32> to vector<8x32xf32>
    %c0_42 = arith.constant 0 : index
    %c0_43 = arith.constant 0 : index
    %c0_44 = arith.constant 0 : index
    %107 = vector.load %arg8[%c0_42, %c0_43, %c0_44] : memref<1x32x32xbf16, #tpu.memory_space<vmem>>, vector<1x32x32xbf16>
    %108 = vector.shape_cast %107 : vector<1x32x32xbf16> to vector<32x32xbf16>
    %109 = arith.truncf %106 : vector<8x32xf32> to vector<8x32xbf16>
    %cst_45 = arith.constant dense<0.000000e+00> : vector<8x32xf32>
    %110 = tpu.matmul %109, %108, %cst_45 {dimension_numbers = #tpu.dot_dimension_numbers<[1], [0], [0], [1], [0, 0, 1, 1], [], []>} : vector<8x32xbf16>, vector<32x32xbf16>, vector<8x32xf32> -> vector<8x32xf32>
    %c0_46 = arith.constant 0 : index
    %c0_47 = arith.constant 0 : index
    %c0_48 = arith.constant 0 : index
    %111 = vector.load %arg9[%c0_46, %c0_47, %c0_48] : memref<1x1x32xf32, #tpu.memory_space<vmem>>, vector<1x1x32xf32>
    %112 = vector.shape_cast %111 : vector<1x1x32xf32> to vector<1x32xf32>
    %113 = vector.broadcast %112 : vector<1x32xf32> to vector<8x32xf32>
    %114 = arith.addf %110, %113 : vector<8x32xf32>
    %115 = arith.addf %114, %4 : vector<8x32xf32>
    %c0_49 = arith.constant 0 : index
    %c0_50 = arith.constant 0 : index
    %c0_51 = arith.constant 0 : index
    %116 = vector.load %arg10[%c0_49, %c0_50, %c0_51] : memref<1x1x32xf32, #tpu.memory_space<vmem>>, vector<1x1x32xf32>
    %117 = vector.shape_cast %116 : vector<1x1x32xf32> to vector<1x32xf32>
    %c0_52 = arith.constant 0 : index
    %c0_53 = arith.constant 0 : index
    %c0_54 = arith.constant 0 : index
    %118 = vector.load %arg11[%c0_52, %c0_53, %c0_54] : memref<1x1x32xf32, #tpu.memory_space<vmem>>, vector<1x1x32xf32>
    %119 = vector.shape_cast %118 : vector<1x1x32xf32> to vector<1x32xf32>
    %cst_55 = arith.constant dense<0.000000e+00> : vector<8xf32>
    %120 = vector.multi_reduction <add>, %115, %cst_55 [1] : vector<8x32xf32> to vector<8xf32>
    %121 = vector.shape_cast %120 : vector<8xf32> to vector<8x1xf32>
    %cst_56 = arith.constant 3.200000e+01 : f32
    %122 = vector.broadcast %cst_56 : f32 to vector<8x1xf32>
    %123 = arith.divf %121, %122 : vector<8x1xf32>
    %124 = vector.broadcast %123 : vector<8x1xf32> to vector<8x32xf32>
    %125 = arith.subf %115, %124 : vector<8x32xf32>
    %126 = arith.mulf %125, %125 : vector<8x32xf32>
    %cst_57 = arith.constant dense<0.000000e+00> : vector<8xf32>
    %127 = vector.multi_reduction <add>, %126, %cst_57 [1] : vector<8x32xf32> to vector<8xf32>
    %128 = vector.shape_cast %127 : vector<8xf32> to vector<8x1xf32>
    %cst_58 = arith.constant 3.200000e+01 : f32
    %129 = vector.broadcast %cst_58 : f32 to vector<8x1xf32>
    %130 = arith.divf %128, %129 : vector<8x1xf32>
    %cst_59 = arith.constant 9.99999996E-13 : f32
    %131 = vector.broadcast %cst_59 : f32 to vector<8x1xf32>
    %132 = arith.addf %130, %131 : vector<8x1xf32>
    %133 = math.rsqrt %132 : vector<8x1xf32>
    %134 = vector.broadcast %133 : vector<8x1xf32> to vector<8x32xf32>
    %135 = arith.mulf %125, %134 : vector<8x32xf32>
    %136 = vector.broadcast %117 : vector<1x32xf32> to vector<8x32xf32>
    %137 = arith.mulf %136, %135 : vector<8x32xf32>
    %138 = vector.broadcast %119 : vector<1x32xf32> to vector<8x32xf32>
    %139 = arith.addf %137, %138 : vector<8x32xf32>
    %c0_60 = arith.constant 0 : index
    %c0_61 = arith.constant 0 : index
    %c0_62 = arith.constant 0 : index
    %140 = vector.load %arg12[%c0_60, %c0_61, %c0_62] : memref<1x32x64xbf16, #tpu.memory_space<vmem>>, vector<1x32x64xbf16>
    %141 = vector.shape_cast %140 : vector<1x32x64xbf16> to vector<32x64xbf16>
    %142 = arith.truncf %139 : vector<8x32xf32> to vector<8x32xbf16>
    %cst_63 = arith.constant dense<0.000000e+00> : vector<8x64xf32>
    %143 = tpu.matmul %142, %141, %cst_63 {dimension_numbers = #tpu.dot_dimension_numbers<[1], [0], [0], [1], [0, 0, 1, 1], [], []>} : vector<8x32xbf16>, vector<32x64xbf16>, vector<8x64xf32> -> vector<8x64xf32>
    %c0_64 = arith.constant 0 : index
    %c0_65 = arith.constant 0 : index
    %c0_66 = arith.constant 0 : index
    %144 = vector.load %arg13[%c0_64, %c0_65, %c0_66] : memref<1x1x64xf32, #tpu.memory_space<vmem>>, vector<1x1x64xf32>
    %145 = vector.shape_cast %144 : vector<1x1x64xf32> to vector<1x64xf32>
    %146 = vector.broadcast %145 : vector<1x64xf32> to vector<8x64xf32>
    %147 = arith.addf %143, %146 : vector<8x64xf32>
    %cst_67 = arith.constant 5.000000e-01 : f32
    %148 = vector.broadcast %cst_67 : f32 to vector<8x64xf32>
    %149 = arith.mulf %148, %147 : vector<8x64xf32>
    %cst_68 = arith.constant 4.471500e-02 : f32
    %150 = vector.broadcast %cst_68 : f32 to vector<8x64xf32>
    %151 = arith.mulf %150, %147 : vector<8x64xf32>
    %152 = arith.mulf %151, %147 : vector<8x64xf32>
    %153 = arith.mulf %152, %147 : vector<8x64xf32>
    %154 = arith.addf %147, %153 : vector<8x64xf32>
    %cst_69 = arith.constant 0.797884583 : f32
    %155 = vector.broadcast %cst_69 : f32 to vector<8x64xf32>
    %156 = arith.mulf %155, %154 : vector<8x64xf32>
    %157 = math.tanh %156 : vector<8x64xf32>
    %cst_70 = arith.constant 1.000000e+00 : f32
    %158 = vector.broadcast %cst_70 : f32 to vector<8x64xf32>
    %159 = arith.addf %158, %157 : vector<8x64xf32>
    %160 = arith.mulf %149, %159 : vector<8x64xf32>
    %c0_71 = arith.constant 0 : index
    %c0_72 = arith.constant 0 : index
    %c0_73 = arith.constant 0 : index
    %161 = vector.load %arg14[%c0_71, %c0_72, %c0_73] : memref<1x64x32xbf16, #tpu.memory_space<vmem>>, vector<1x64x32xbf16>
    %162 = vector.shape_cast %161 : vector<1x64x32xbf16> to vector<64x32xbf16>
    %163 = arith.truncf %160 : vector<8x64xf32> to vector<8x64xbf16>
    %cst_74 = arith.constant dense<0.000000e+00> : vector<8x32xf32>
    %164 = tpu.matmul %163, %162, %cst_74 {dimension_numbers = #tpu.dot_dimension_numbers<[1], [0], [0], [1], [0, 0, 1, 1], [], []>} : vector<8x64xbf16>, vector<64x32xbf16>, vector<8x32xf32> -> vector<8x32xf32>
    %c0_75 = arith.constant 0 : index
    %c0_76 = arith.constant 0 : index
    %c0_77 = arith.constant 0 : index
    %165 = vector.load %arg15[%c0_75, %c0_76, %c0_77] : memref<1x1x32xf32, #tpu.memory_space<vmem>>, vector<1x1x32xf32>
    %166 = vector.shape_cast %165 : vector<1x1x32xf32> to vector<1x32xf32>
    %167 = vector.broadcast %166 : vector<1x32xf32> to vector<8x32xf32>
    %168 = arith.addf %164, %167 : vector<8x32xf32>
    %169 = arith.addf %168, %139 : vector<8x32xf32>
    %c0_78 = arith.constant 0 : index
    %c0_79 = arith.constant 0 : index
    %c0_80 = arith.constant 0 : index
    %170 = vector.load %arg16[%c0_78, %c0_79, %c0_80] : memref<1x1x32xf32, #tpu.memory_space<vmem>>, vector<1x1x32xf32>
    %171 = vector.shape_cast %170 : vector<1x1x32xf32> to vector<1x32xf32>
    %c0_81 = arith.constant 0 : index
    %c0_82 = arith.constant 0 : index
    %c0_83 = arith.constant 0 : index
    %172 = vector.load %arg17[%c0_81, %c0_82, %c0_83] : memref<1x1x32xf32, #tpu.memory_space<vmem>>, vector<1x1x32xf32>
    %173 = vector.shape_cast %172 : vector<1x1x32xf32> to vector<1x32xf32>
    %cst_84 = arith.constant dense<0.000000e+00> : vector<8xf32>
    %174 = vector.multi_reduction <add>, %169, %cst_84 [1] : vector<8x32xf32> to vector<8xf32>
    %175 = vector.shape_cast %174 : vector<8xf32> to vector<8x1xf32>
    %cst_85 = arith.constant 3.200000e+01 : f32
    %176 = vector.broadcast %cst_85 : f32 to vector<8x1xf32>
    %177 = arith.divf %175, %176 : vector<8x1xf32>
    %178 = vector.broadcast %177 : vector<8x1xf32> to vector<8x32xf32>
    %179 = arith.subf %169, %178 : vector<8x32xf32>
    %180 = arith.mulf %179, %179 : vector<8x32xf32>
    %cst_86 = arith.constant dense<0.000000e+00> : vector<8xf32>
    %181 = vector.multi_reduction <add>, %180, %cst_86 [1] : vector<8x32xf32> to vector<8xf32>
    %182 = vector.shape_cast %181 : vector<8xf32> to vector<8x1xf32>
    %cst_87 = arith.constant 3.200000e+01 : f32
    %183 = vector.broadcast %cst_87 : f32 to vector<8x1xf32>
    %184 = arith.divf %182, %183 : vector<8x1xf32>
    %cst_88 = arith.constant 9.99999996E-13 : f32
    %185 = vector.broadcast %cst_88 : f32 to vector<8x1xf32>
    %186 = arith.addf %184, %185 : vector<8x1xf32>
    %187 = math.rsqrt %186 : vector<8x1xf32>
    %188 = vector.broadcast %187 : vector<8x1xf32> to vector<8x32xf32>
    %189 = arith.mulf %179, %188 : vector<8x32xf32>
    %190 = vector.broadcast %171 : vector<1x32xf32> to vector<8x32xf32>
    %191 = arith.mulf %190, %189 : vector<8x32xf32>
    %192 = vector.broadcast %173 : vector<1x32xf32> to vector<8x32xf32>
    %193 = arith.addf %191, %192 : vector<8x32xf32>
    %194 = vector.shape_cast %193 : vector<8x32xf32> to vector<1x8x32xf32>
    %c0_89 = arith.constant 0 : index
    %c0_90 = arith.constant 0 : index
    %c0_91 = arith.constant 0 : index
    %195 = vector.load %arg22[%c0_89, %c0_90, %c0_91] : memref<1x8x32xf32, #tpu.memory_space<vmem>>, vector<1x8x32xf32>
    tpu.vector_store %arg22[%c0_89, %c0_90, %c0_91], %194 {strides = array<i32>} : memref<1x8x32xf32, #tpu.memory_space<vmem>>, vector<1x8x32xf32>,
    %c0_92 = arith.constant 0 : index
    %c0_93 = arith.constant 0 : index
    %c0_94 = arith.constant 0 : index
    %c0_95 = arith.constant 0 : index
    %196 = vector.load %arg20[%c0_92, %c0_93, %c0_94, %c0_95] : memref<1x1x8x32xf32, #tpu.memory_space<vmem>>, vector<1x1x8x32xf32>
    %197 = vector.shape_cast %196 : vector<1x1x8x32xf32> to vector<1x8x32xf32>
    %198 = vector.shape_cast %194 : vector<1x8x32xf32> to vector<1x1x8x32xf32>
    tpu.vector_store %arg20[%c0_92, %c0_93, %c0_94, %c0_95], %198 {strides = array<i32>} : memref<1x1x8x32xf32, #tpu.memory_space<vmem>>, vector<1x1x8x32xf32>,
    %c1_i32 = arith.constant 1 : i32
    %199 = arith.cmpi eq, %arg1, %c1_i32 : i32
    %200 = arith.extui %199 : i1 to i32
    %c0_i32_96 = arith.constant 0 : i32
    %201 = arith.cmpi ne, %200, %c0_i32_96 : i32
    scf.if %201 {
      %202 = vector.extract_strided_slice %194 {offsets = [0, 0, 0], sizes = [1, 1, 32], strides = [1, 1, 1]} : vector<1x8x32xf32> to vector<1x1x32xf32>
      %203 = vector.shape_cast %202 : vector<1x1x32xf32> to vector<1x32xf32>
      %c0_97 = arith.constant 0 : index
      %c0_98 = arith.constant 0 : index
      %204 = vector.load %arg18[%c0_97, %c0_98] : memref<32x32xbf16, #tpu.memory_space<vmem>>, vector<32x32xbf16>
      %205 = arith.truncf %203 : vector<1x32xf32> to vector<1x32xbf16>
      %cst_99 = arith.constant dense<0.000000e+00> : vector<1x32xf32>
      %206 = tpu.matmul %205, %204, %cst_99 {dimension_numbers = #tpu.dot_dimension_numbers<[1], [0], [0], [1], [0, 0, 1, 1], [], []>} : vector<1x32xbf16>, vector<32x32xbf16>, vector<1x32xf32> -> vector<1x32xf32>
      %c0_100 = arith.constant 0 : index
      %c0_101 = arith.constant 0 : index
      %207 = vector.load %arg19[%c0_100, %c0_101] : memref<1x32xf32, #tpu.memory_space<vmem>>, vector<1x32xf32>
      %208 = arith.addf %206, %207 : vector<1x32xf32>
      %209 = math.tanh %208 : vector<1x32xf32>
      %210 = vector.shape_cast %209 : vector<1x32xf32> to vector<1x1x32xf32>
      %c0_102 = arith.constant 0 : index
      %c0_103 = arith.constant 0 : index
      %c0_104 = arith.constant 0 : index
      %211 = vector.load %arg21[%c0_102, %c0_103, %c0_104] : memref<1x1x32xf32, #tpu.memory_space<vmem>>, vector<1x1x32xf32>
      tpu.vector_store %arg21[%c0_102, %c0_103, %c0_104], %210 {strides = array<i32>} : memref<1x1x32xf32, #tpu.memory_space<vmem>>, vector<1x1x32xf32>,
    } else {
    }
    return
  }
  func.func @transform_0(%arg0: i32, %arg1: i32) -> (i32, i32, i32) {
    %c0_i32 = arith.constant 0 : i32
    %c0_i32_0 = arith.constant 0 : i32
    %c0_i32_1 = arith.constant 0 : i32
    return %arg0, %c0_i32, %c0_i32_0 : i32, i32, i32
  }
  func.func @transform_1(%arg0: i32, %arg1: i32) -> (i32, i32, i32) {
    %c0_i32 = arith.constant 0 : i32
    %c0_i32_0 = arith.constant 0 : i32
    %c0_i32_1 = arith.constant 0 : i32
    return %arg0, %c0_i32, %c0_i32_0 : i32, i32, i32
  }
  func.func @transform_2(%arg0: i32, %arg1: i32) -> (i32, i32) {
    %c0_i32 = arith.constant 0 : i32
    %c0_i32_0 = arith.constant 0 : i32
    %c0_i32_1 = arith.constant 0 : i32
    return %c0_i32, %c0_i32_0 : i32, i32
  }
  func.func @transform_3(%arg0: i32, %arg1: i32) -> (i32, i32) {
    %c0_i32 = arith.constant 0 : i32
    %c0_i32_0 = arith.constant 0 : i32
    %c0_i32_1 = arith.constant 0 : i32
    return %c0_i32, %c0_i32_0 : i32, i32
  }
  func.func @transform_4(%arg0: i32, %arg1: i32) -> (i32, i32, i32) {
    %c0_i32 = arith.constant 0 : i32
    %c0_i32_0 = arith.constant 0 : i32
    %c0_i32_1 = arith.constant 0 : i32
    return %arg1, %c0_i32, %c0_i32_0 : i32, i32, i32
  }
  func.func @transform_5(%arg0: i32, %arg1: i32) -> (i32, i32, i32) {
    %c0_i32 = arith.constant 0 : i32
    %c0_i32_0 = arith.constant 0 : i32
    %c0_i32_1 = arith.constant 0 : i32
    return %arg1, %c0_i32, %c0_i32_0 : i32, i32, i32
  }
  func.func @transform_6(%arg0: i32, %arg1: i32) -> (i32, i32, i32) {
    %c0_i32 = arith.constant 0 : i32
    %c0_i32_0 = arith.constant 0 : i32
    %c0_i32_1 = arith.constant 0 : i32
    return %arg1, %c0_i32, %c0_i32_0 : i32, i32, i32
  }
  func.func @transform_7(%arg0: i32, %arg1: i32) -> (i32, i32, i32) {
    %c0_i32 = arith.constant 0 : i32
    %c0_i32_0 = arith.constant 0 : i32
    %c0_i32_1 = arith.constant 0 : i32
    return %arg1, %c0_i32, %c0_i32_0 : i32, i32, i32
  }
  func.func @transform_8(%arg0: i32, %arg1: i32) -> (i32, i32, i32) {
    %c0_i32 = arith.constant 0 : i32
    %c0_i32_0 = arith.constant 0 : i32
    %c0_i32_1 = arith.constant 0 : i32
    return %arg1, %c0_i32, %c0_i32_0 : i32, i32, i32
  }
  func.func @transform_9(%arg0: i32, %arg1: i32) -> (i32, i32, i32) {
    %c0_i32 = arith.constant 0 : i32
    %c0_i32_0 = arith.constant 0 : i32
    %c0_i32_1 = arith.constant 0 : i32
    return %arg1, %c0_i32, %c0_i32_0 : i32, i32, i32
  }
  func.func @transform_10(%arg0: i32, %arg1: i32) -> (i32, i32, i32) {
    %c0_i32 = arith.constant 0 : i32
    %c0_i32_0 = arith.constant 0 : i32
    %c0_i32_1 = arith.constant 0 : i32
    return %arg1, %c0_i32, %c0_i32_0 : i32, i32, i32
  }
  func.func @transform_11(%arg0: i32, %arg1: i32) -> (i32, i32, i32) {
    %c0_i32 = arith.constant 0 : i32
    %c0_i32_0 = arith.constant 0 : i32
    %c0_i32_1 = arith.constant 0 : i32
    return %arg1, %c0_i32, %c0_i32_0 : i32, i32, i32
  }
  func.func @transform_12(%arg0: i32, %arg1: i32) -> (i32, i32, i32) {
    %c0_i32 = arith.constant 0 : i32
    %c0_i32_0 = arith.constant 0 : i32
    %c0_i32_1 = arith.constant 0 : i32
    return %arg1, %c0_i32, %c0_i32_0 : i32, i32, i32
  }
  func.func @transform_13(%arg0: i32, %arg1: i32) -> (i32, i32, i32) {
    %c0_i32 = arith.constant 0 : i32
    %c0_i32_0 = arith.constant 0 : i32
    %c0_i32_1 = arith.constant 0 : i32
    return %arg1, %c0_i32, %c0_i32_0 : i32, i32, i32
  }
  func.func @transform_14(%arg0: i32, %arg1: i32) -> (i32, i32, i32) {
    %c0_i32 = arith.constant 0 : i32
    %c0_i32_0 = arith.constant 0 : i32
    %c0_i32_1 = arith.constant 0 : i32
    return %arg1, %c0_i32, %c0_i32_0 : i32, i32, i32
  }
  func.func @transform_15(%arg0: i32, %arg1: i32) -> (i32, i32, i32) {
    %c0_i32 = arith.constant 0 : i32
    %c0_i32_0 = arith.constant 0 : i32
    %c0_i32_1 = arith.constant 0 : i32
    return %arg1, %c0_i32, %c0_i32_0 : i32, i32, i32
  }
  func.func @transform_16(%arg0: i32, %arg1: i32) -> (i32, i32) {
    %c0_i32 = arith.constant 0 : i32
    %c0_i32_0 = arith.constant 0 : i32
    %c0_i32_1 = arith.constant 0 : i32
    return %c0_i32, %c0_i32_0 : i32, i32
  }
  func.func @transform_17(%arg0: i32, %arg1: i32) -> (i32, i32) {
    %c0_i32 = arith.constant 0 : i32
    %c0_i32_0 = arith.constant 0 : i32
    %c0_i32_1 = arith.constant 0 : i32
    return %c0_i32, %c0_i32_0 : i32, i32
  }
  func.func @transform_18(%arg0: i32, %arg1: i32) -> (i32, i32, i32, i32) {
    %c0_i32 = arith.constant 0 : i32
    %c0_i32_0 = arith.constant 0 : i32
    %c0_i32_1 = arith.constant 0 : i32
    return %arg1, %arg0, %c0_i32, %c0_i32_0 : i32, i32, i32, i32
  }
  func.func @transform_19(%arg0: i32, %arg1: i32) -> (i32, i32, i32) {
    %c0_i32 = arith.constant 0 : i32
    %c0_i32_0 = arith.constant 0 : i32
    %c0_i32_1 = arith.constant 0 : i32
    return %arg0, %c0_i32, %c0_i32_0 : i32, i32, i32
  }
}

</mosaic_0001>

<llo_original>
// kernel: bert_forward.1
$region0: #{bert_forward.1}
  #allocation0 [shape = 'u32[]', space=smem, size = 0x4, offset = 0x4, fixed_abs, tag = 'smem constant byte address 0x4 - core index']
  #allocation1 [shape = 'u32[144,128]{1,0:T(1,128)}', space=vmem, size = 0x12000, scoped, tag = 'internal scratch']
  #allocation2 [shape = 'f32[1,8,32]{2,1,0:T(8,128)}', space=vmem, size = 0x1000, scoped, tag = 'scratch operand']
  #allocation3 [shape = 'f32[1,8,32]{2,1,0:T(8,128)}', space=vmem, size = 0x1000, scoped, tag = 'scratch operand']
  %s0 = inlined_call_operand.hbm [shape: f32[2,8,32], index: 0, kind: input, shape index: {}]
  %s1 = inlined_call_operand.hbm [shape: f32[2,1,8], index: 1, kind: input, shape index: {}]
  %s2 = inlined_call_operand.hbm [shape: f32[1,32], index: 2, kind: input, shape index: {}]
  %s3 = inlined_call_operand.hbm [shape: f32[1,32], index: 3, kind: input, shape index: {}]
  %s4 = inlined_call_operand.hbm [shape: bf16[2,32,96], index: 4, kind: input, shape index: {}]
  %s5 = inlined_call_operand.hbm [shape: f32[2,1,96], index: 5, kind: input, shape index: {}]
  %s6 = inlined_call_operand.hbm [shape: bf16[2,32,32], index: 6, kind: input, shape index: {}]
  %s7 = inlined_call_operand.hbm [shape: f32[2,1,32], index: 7, kind: input, shape index: {}]
  %s8 = inlined_call_operand.hbm [shape: f32[2,1,32], index: 8, kind: input, shape index: {}]
  %s9 = inlined_call_operand.hbm [shape: f32[2,1,32], index: 9, kind: input, shape index: {}]
  %s10 = inlined_call_operand.hbm [shape: bf16[2,32,64], index: 10, kind: input, shape index: {}]
  %s11 = inlined_call_operand.hbm [shape: f32[2,1,64], index: 11, kind: input, shape index: {}]
  %s12 = inlined_call_operand.hbm [shape: bf16[2,64,32], index: 12, kind: input, shape index: {}]
  %s13 = inlined_call_operand.hbm [shape: f32[2,1,32], index: 13, kind: input, shape index: {}]
  %s14 = inlined_call_operand.hbm [shape: f32[2,1,32], index: 14, kind: input, shape index: {}]
  %s15 = inlined_call_operand.hbm [shape: f32[2,1,32], index: 15, kind: input, shape index: {}]
  %s16 = inlined_call_operand.hbm [shape: bf16[32,32], index: 16, kind: input, shape index: {}]
  %s17 = inlined_call_operand.hbm [shape: f32[1,32], index: 17, kind: input, shape index: {}]
  %s18 = inlined_call_operand.hbm [shape: f32[2,2,8,32], index: 18, kind: output, shape index: {0}]
  %s19 = inlined_call_operand.hbm [shape: f32[2,1,32], index: 19, kind: output, shape index: {1}]
  %20 = xla_tuple %s18, %s19
  %s21 = sld [smem:[#allocation0]]
  $region193: #{bert_forward.1} parent=0
    _
  %s23 = ssub.s32 1, %s21
  %s24 = scalar_select 0, %s23, %s21
  $region1: #{bert_forward.1} parent=0
    #allocation4 [shape = 'u8[8192]{0}', space=vmem, size = 0x2000, scoped, tag = 'input window, operand 0']
    #allocation5 [shape = 's32[2]{0}', space=sflag, size = 0x8, scoped, tag = 'scoped memory for bert_forward.1']
    #allocation6 [shape = 's32[2]{0}', space=sflag, size = 0x8, scoped, tag = 'scoped memory for bert_forward.1']
    #allocation7 [shape = 'u8[1024]{0}', space=vmem, size = 0x400, scoped, tag = 'input window, operand 1']
    #allocation8 [shape = 's32[2]{0}', space=sflag, size = 0x8, scoped, tag = 'scoped memory for bert_forward.1']
    #allocation9 [shape = 'u8[512]{0}', space=vmem, size = 0x400, scoped, tag = 'input window, operand 2, single buffered']
    #allocation10 [shape = 'u8[512]{0}', space=vmem, size = 0x400, scoped, tag = 'input window, operand 3, single buffered']
    #allocation11 [shape = 's32[1]{0}', space=sflag, size = 0x4, scoped, tag = 'scoped memory for bert_forward.1']
    #allocation12 [shape = 'u8[16384]{0}', space=vmem, size = 0x4000, scoped, tag = 'input window, operand 4']
    #allocation13 [shape = 'u8[1024]{0}', space=vmem, size = 0x400, scoped, tag = 'input window, operand 5']
    #allocation14 [shape = 'u8[16384]{0}', space=vmem, size = 0x4000, scoped, tag = 'input window, operand 6']
    #allocation15 [shape = 'u8[1024]{0}', space=vmem, size = 0x400, scoped, tag = 'input window, operand 7']
    #allocation16 [shape = 'u8[1024]{0}', space=vmem, size = 0x400, scoped, tag = 'input window, operand 8']
    #allocation17 [shape = 'u8[1024]{0}', space=vmem, size = 0x400, scoped, tag = 'input window, operand 9']
    #allocation18 [shape = 'u8[16384]{0}', space=vmem, size = 0x4000, scoped, tag = 'input window, operand 10']
    #allocation19 [shape = 'u8[1024]{0}', space=vmem, size = 0x400, scoped, tag = 'input window, operand 11']
    #allocation20 [shape = 'u8[32768]{0}', space=vmem, size = 0x8000, scoped, tag = 'input window, operand 12']
    #allocation21 [shape = 'u8[1024]{0}', space=vmem, size = 0x400, scoped, tag = 'input window, operand 13']
    #allocation22 [shape = 'u8[1024]{0}', space=vmem, size = 0x400, scoped, tag = 'input window, operand 14']
    #allocation23 [shape = 'u8[1024]{0}', space=vmem, size = 0x400, scoped, tag = 'input window, operand 15']
    #allocation24 [shape = 'u8[8192]{0}', space=vmem, size = 0x2000, scoped, tag = 'input window, operand 16, single buffered']
    #allocation25 [shape = 'u8[512]{0}', space=vmem, size = 0x400, scoped, tag = 'input window, operand 17, single buffered']
    #allocation26 [shape = 's32[1]{0}', space=sflag, size = 0x4, scoped, tag = 'scoped memory for bert_forward.1']
    #allocation27 [shape = 'u8[8192]{0}', space=vmem, size = 0x2000, scoped, tag = 'output window, operand 0']
    #allocation28 [shape = 'u8[1024]{0}', space=vmem, size = 0x400, scoped, tag = 'output window, operand 1']
    #allocation29 [shape = 's32[2]{0}', space=sflag, size = 0x8, scoped, tag = 'scoped memory for bert_forward.1']
    %25 = vsyncpa [#allocation5], 0
    %s26 = scalar_lea.sflag [#allocation5], 1
    %27 = vsyncpa %s26, 0
    %28 = vsyncpa [#allocation8], 0
    %s29 = scalar_lea.sflag [#allocation8], 1
    %30 = vsyncpa %s29, 0
    %31 = vsyncpa [#allocation11], 0
    %32 = vsyncpa [#allocation26], 0
    %33 = vsyncpa [#allocation6], 0
    %s34 = scalar_lea.sflag [#allocation6], 1
    %35 = vsyncpa %s34, 0
    %36 = vsyncpa [#allocation29], 0
    %s37 = scalar_lea.sflag [#allocation29], 1
    %38 = vsyncpa %s37, 0
    loop: start=0, step=1, limit=6
    $region2: #{bert_forward.1} parent=1 // loop_pre_header
      _
    $region3: #{bert_forward.1} parent=1 // loop_header
      %s40 = sphi 0, %s44
      %p41 = scmp.ge.s32.totalorder %s40, 6
      %s47 = sphi 0, %s59
      %s48 = sphi 0, %s55
      %s49 = sphi 0, %s47
      %s50 = sphi 0, %s48
      %s51 = sphi 0, %s49
      %s52 = sphi 0, %s50
      %s62 = sphi 0, %s64
      %s65 = sphi 0, %s62
      %s66 = sphi 0, %s65
      %s82 = sphi 0, %s66
      %s88 = sphi 0, %s90
      %s91 = sphi 0, %s88
      %s92 = sphi 0, %s91
      %s108 = sphi 0, %s92
      %s112 = sphi 0, %s112
      %s114 = sphi 0, %s112
      %s115 = sphi 0, %s114
      %s129 = sphi 0, %s115
      %s133 = sphi 0, %s133
      %s135 = sphi 0, %s133
      %s136 = sphi 0, %s135
      %s150 = sphi 0, %s136
      %s156 = sphi 0, %s158
      %s159 = sphi 0, %s156
      %s160 = sphi 0, %s159
      %s176 = sphi 0, %s160
      %s182 = sphi 0, %s184
      %s185 = sphi 0, %s182
      %s186 = sphi 0, %s185
      %s202 = sphi 0, %s186
      %s208 = sphi 0, %s210
      %s211 = sphi 0, %s208
      %s212 = sphi 0, %s211
      %s228 = sphi 0, %s212
      %s234 = sphi 0, %s236
      %s237 = sphi 0, %s234
      %s238 = sphi 0, %s237
      %s254 = sphi 0, %s238
      %s260 = sphi 0, %s262
      %s263 = sphi 0, %s260
      %s264 = sphi 0, %s263
      %s280 = sphi 0, %s264
      %s286 = sphi 0, %s288
      %s289 = sphi 0, %s286
      %s290 = sphi 0, %s289
      %s306 = sphi 0, %s290
      %s312 = sphi 0, %s314
      %s315 = sphi 0, %s312
      %s316 = sphi 0, %s315
      %s332 = sphi 0, %s316
      %s338 = sphi 0, %s340
      %s341 = sphi 0, %s338
      %s342 = sphi 0, %s341
      %s358 = sphi 0, %s342
      %s364 = sphi 0, %s366
      %s367 = sphi 0, %s364
      %s368 = sphi 0, %s367
      %s384 = sphi 0, %s368
      %s390 = sphi 0, %s392
      %s393 = sphi 0, %s390
      %s394 = sphi 0, %s393
      %s410 = sphi 0, %s394
      %s416 = sphi 0, %s418
      %s419 = sphi 0, %s416
      %s420 = sphi 0, %s419
      %s436 = sphi 0, %s420
      %s442 = sphi 0, %s444
      %s445 = sphi 0, %s442
      %s446 = sphi 0, %s445
      %s462 = sphi 0, %s446
      %s466 = sphi 0, %s466
      %s468 = sphi 0, %s466
      %s469 = sphi 0, %s468
      %s483 = sphi 0, %s469
      %s487 = sphi 0, %s487
      %s489 = sphi 0, %s487
      %s490 = sphi 0, %s489
      %s504 = sphi 0, %s490
      %s512 = sphi 0, %s514
      %s515 = sphi 0, %s512
      %s516 = sphi 0, %s515
      %s532 = sphi 0, %s516
      %s538 = sphi 0, %s540
      %s541 = sphi 0, %s538
      %s542 = sphi 0, %s541
      %s558 = sphi 0, %s542
    $region4: #{bert_forward.1} parent=1 // loop_header_branch
      %43 = sbr.rel (%p41) target = $region8
    $region5: #{bert_forward.1} parent=1 // loop_body
      %s45 = ssub.s32 %s40, 1
      %s46 = ssub.s32 %s40, 2
      %s53 = sadd.s32 1, %s48
      %p54 = scmp.ge.s32.totalorder %s53, 2
      %s55 = scalar_select %p54, 0, %s53
      %s56 = sadd.s32 1, %s47
      %s57 = scalar_select %p54, %s56, %s47
      %p58 = scmp.ge.s32.totalorder %s57, 2
      %s59 = scalar_select %p58, 0, %s57
      %s60 = ssub.s32 %s47, %s59
      %p61 = scmp.eq.s32.totalorder %s60, 0
      %s63 = sadd.s32 %s62, 1
      %s64 = scalar_select %p61, %s62, %s63
      %p67 = pneg %p61
      %p68 = scmp.eq.s32.totalorder %s40, 3
      %p69 = por %p67, %p68
      %p70 = scmp.ne.s32.totalorder %s62, %s65
      %p71 = scmp.eq.s32.totalorder %s40, 0
      %p72 = por %p70, %p71
      %p73 = scmp.ne.s32.totalorder %s62, %s65
      %p74 = scmp.eq.s32.totalorder %s45, 3
      %p75 = por %p73, %p74
      %p76 = scmp.ne.s32.totalorder %s65, %s66
      %p77 = scmp.eq.s32.totalorder %s45, 0
      %p78 = por %p76, %p77
      %p79 = scmp.ne.s32.totalorder %s65, %s66
      %p80 = scmp.eq.s32.totalorder %s46, 3
      %p81 = por %p79, %p80
      %p83 = scmp.ne.s32.totalorder %s66, %s82
      %p84 = scmp.eq.s32.totalorder %s46, 0
      %p85 = por %p83, %p84
      %s86 = ssub.s32 %s47, %s59
      %p87 = scmp.eq.s32.totalorder %s86, 0
      %s89 = sadd.s32 %s88, 1
      %s90 = scalar_select %p87, %s88, %s89
      %p93 = pneg %p87
      %p94 = scmp.eq.s32.totalorder %s40, 3
      %p95 = por %p93, %p94
      %p96 = scmp.ne.s32.totalorder %s88, %s91
      %p97 = scmp.eq.s32.totalorder %s40, 0
      %p98 = por %p96, %p97
      %p99 = scmp.ne.s32.totalorder %s88, %s91
      %p100 = scmp.eq.s32.totalorder %s45, 3
      %p101 = por %p99, %p100
      %p102 = scmp.ne.s32.totalorder %s91, %s92
      %p103 = scmp.eq.s32.totalorder %s45, 0
      %p104 = por %p102, %p103
      %p105 = scmp.ne.s32.totalorder %s91, %s92
      %p106 = scmp.eq.s32.totalorder %s46, 3
      %p107 = por %p105, %p106
      %p109 = scmp.ne.s32.totalorder %s92, %s108
      %p110 = scmp.eq.s32.totalorder %s46, 0
      %p111 = por %p109, %p110
      %s113 = sadd.s32 %s112, 1
      %p116 = scmp.eq.s32.totalorder %s40, 3
      %p117 = scmp.ne.s32.totalorder %s112, %s114
      %p118 = scmp.eq.s32.totalorder %s40, 0
      %p119 = por %p117, %p118
      %p120 = scmp.ne.s32.totalorder %s112, %s114
      %p121 = scmp.eq.s32.totalorder %s45, 3
      %p122 = por %p120, %p121
      %p123 = scmp.ne.s32.totalorder %s114, %s115
      %p124 = scmp.eq.s32.totalorder %s45, 0
      %p125 = por %p123, %p124
      %p126 = scmp.ne.s32.totalorder %s114, %s115
      %p127 = scmp.eq.s32.totalorder %s46, 3
      %p128 = por %p126, %p127
      %p130 = scmp.ne.s32.totalorder %s115, %s129
      %p131 = scmp.eq.s32.totalorder %s46, 0
      %p132 = por %p130, %p131
      %s134 = sadd.s32 %s133, 1
      %p137 = scmp.eq.s32.totalorder %s40, 3
      %p138 = scmp.ne.s32.totalorder %s133, %s135
      %p139 = scmp.eq.s32.totalorder %s40, 0
      %p140 = por %p138, %p139
      %p141 = scmp.ne.s32.totalorder %s133, %s135
      %p142 = scmp.eq.s32.totalorder %s45, 3
      %p143 = por %p141, %p142
      %p144 = scmp.ne.s32.totalorder %s135, %s136
      %p145 = scmp.eq.s32.totalorder %s45, 0
      %p146 = por %p144, %p145
      %p147 = scmp.ne.s32.totalorder %s135, %s136
      %p148 = scmp.eq.s32.totalorder %s46, 3
      %p149 = por %p147, %p148
      %p151 = scmp.ne.s32.totalorder %s136, %s150
      %p152 = scmp.eq.s32.totalorder %s46, 0
      %p153 = por %p151, %p152
      %s154 = ssub.s32 %s48, %s55
      %p155 = scmp.eq.s32.totalorder %s154, 0
      %s157 = sadd.s32 %s156, 1
      %s158 = scalar_select %p155, %s156, %s157
      %p161 = pneg %p155
      %p162 = scmp.eq.s32.totalorder %s40, 3
      %p163 = por %p161, %p162
      %p164 = scmp.ne.s32.totalorder %s156, %s159
      %p165 = scmp.eq.s32.totalorder %s40, 0
      %p166 = por %p164, %p165
      %p167 = scmp.ne.s32.totalorder %s156, %s159
      %p168 = scmp.eq.s32.totalorder %s45, 3
      %p169 = por %p167, %p168
      %p170 = scmp.ne.s32.totalorder %s159, %s160
      %p171 = scmp.eq.s32.totalorder %s45, 0
      %p172 = por %p170, %p171
      %p173 = scmp.ne.s32.totalorder %s159, %s160
      %p174 = scmp.eq.s32.totalorder %s46, 3
      %p175 = por %p173, %p174
      %p177 = scmp.ne.s32.totalorder %s160, %s176
      %p178 = scmp.eq.s32.totalorder %s46, 0
      %p179 = por %p177, %p178
      %s180 = ssub.s32 %s48, %s55
      %p181 = scmp.eq.s32.totalorder %s180, 0
      %s183 = sadd.s32 %s182, 1
      %s184 = scalar_select %p181, %s182, %s183
      %p187 = pneg %p181
      %p188 = scmp.eq.s32.totalorder %s40, 3
      %p189 = por %p187, %p188
      %p190 = scmp.ne.s32.totalorder %s182, %s185
      %p191 = scmp.eq.s32.totalorder %s40, 0
      %p192 = por %p190, %p191
      %p193 = scmp.ne.s32.totalorder %s182, %s185
      %p194 = scmp.eq.s32.totalorder %s45, 3
      %p195 = por %p193, %p194
      %p196 = scmp.ne.s32.totalorder %s185, %s186
      %p197 = scmp.eq.s32.totalorder %s45, 0
      %p198 = por %p196, %p197
      %p199 = scmp.ne.s32.totalorder %s185, %s186
      %p200 = scmp.eq.s32.totalorder %s46, 3
      %p201 = por %p199, %p200
      %p203 = scmp.ne.s32.totalorder %s186, %s202
      %p204 = scmp.eq.s32.totalorder %s46, 0
      %p205 = por %p203, %p204
      %s206 = ssub.s32 %s48, %s55
      %p207 = scmp.eq.s32.totalorder %s206, 0
      %s209 = sadd.s32 %s208, 1
      %s210 = scalar_select %p207, %s208, %s209
      %p213 = pneg %p207
      %p214 = scmp.eq.s32.totalorder %s40, 3
      %p215 = por %p213, %p214
      %p216 = scmp.ne.s32.totalorder %s208, %s211
      %p217 = scmp.eq.s32.totalorder %s40, 0
      %p218 = por %p216, %p217
      %p219 = scmp.ne.s32.totalorder %s208, %s211
      %p220 = scmp.eq.s32.totalorder %s45, 3
      %p221 = por %p219, %p220
      %p222 = scmp.ne.s32.totalorder %s211, %s212
      %p223 = scmp.eq.s32.totalorder %s45, 0
      %p224 = por %p222, %p223
      %p225 = scmp.ne.s32.totalorder %s211, %s212
      %p226 = scmp.eq.s32.totalorder %s46, 3
      %p227 = por %p225, %p226
      %p229 = scmp.ne.s32.totalorder %s212, %s228
      %p230 = scmp.eq.s32.totalorder %s46, 0
      %p231 = por %p229, %p230
      %s232 = ssub.s32 %s48, %s55
      %p233 = scmp.eq.s32.totalorder %s232, 0
      %s235 = sadd.s32 %s234, 1
      %s236 = scalar_select %p233, %s234, %s235
      %p239 = pneg %p233
      %p240 = scmp.eq.s32.totalorder %s40, 3
      %p241 = por %p239, %p240
      %p242 = scmp.ne.s32.totalorder %s234, %s237
      %p243 = scmp.eq.s32.totalorder %s40, 0
      %p244 = por %p242, %p243
      %p245 = scmp.ne.s32.totalorder %s234, %s237
      %p246 = scmp.eq.s32.totalorder %s45, 3
      %p247 = por %p245, %p246
      %p248 = scmp.ne.s32.totalorder %s237, %s238
      %p249 = scmp.eq.s32.totalorder %s45, 0
      %p250 = por %p248, %p249
      %p251 = scmp.ne.s32.totalorder %s237, %s238
      %p252 = scmp.eq.s32.totalorder %s46, 3
      %p253 = por %p251, %p252
      %p255 = scmp.ne.s32.totalorder %s238, %s254
      %p256 = scmp.eq.s32.totalorder %s46, 0
      %p257 = por %p255, %p256
      %s258 = ssub.s32 %s48, %s55
      %p259 = scmp.eq.s32.totalorder %s258, 0
      %s261 = sadd.s32 %s260, 1
      %s262 = scalar_select %p259, %s260, %s261
      %p265 = pneg %p259
      %p266 = scmp.eq.s32.totalorder %s40, 3
      %p267 = por %p265, %p266
      %p268 = scmp.ne.s32.totalorder %s260, %s263
      %p269 = scmp.eq.s32.totalorder %s40, 0
      %p270 = por %p268, %p269
      %p271 = scmp.ne.s32.totalorder %s260, %s263
      %p272 = scmp.eq.s32.totalorder %s45, 3
      %p273 = por %p271, %p272
      %p274 = scmp.ne.s32.totalorder %s263, %s264
      %p275 = scmp.eq.s32.totalorder %s45, 0
      %p276 = por %p274, %p275
      %p277 = scmp.ne.s32.totalorder %s263, %s264
      %p278 = scmp.eq.s32.totalorder %s46, 3
      %p279 = por %p277, %p278
      %p281 = scmp.ne.s32.totalorder %s264, %s280
      %p282 = scmp.eq.s32.totalorder %s46, 0
      %p283 = por %p281, %p282
      %s284 = ssub.s32 %s48, %s55
      %p285 = scmp.eq.s32.totalorder %s284, 0
      %s287 = sadd.s32 %s286, 1
      %s288 = scalar_select %p285, %s286, %s287
      %p291 = pneg %p285
      %p292 = scmp.eq.s32.totalorder %s40, 3
      %p293 = por %p291, %p292
      %p294 = scmp.ne.s32.totalorder %s286, %s289
      %p295 = scmp.eq.s32.totalorder %s40, 0
      %p296 = por %p294, %p295
      %p297 = scmp.ne.s32.totalorder %s286, %s289
      %p298 = scmp.eq.s32.totalorder %s45, 3
      %p299 = por %p297, %p298
      %p300 = scmp.ne.s32.totalorder %s289, %s290
      %p301 = scmp.eq.s32.totalorder %s45, 0
      %p302 = por %p300, %p301
      %p303 = scmp.ne.s32.totalorder %s289, %s290
      %p304 = scmp.eq.s32.totalorder %s46, 3
      %p305 = por %p303, %p304
      %p307 = scmp.ne.s32.totalorder %s290, %s306
      %p308 = scmp.eq.s32.totalorder %s46, 0
      %p309 = por %p307, %p308
      %s310 = ssub.s32 %s48, %s55
      %p311 = scmp.eq.s32.totalorder %s310, 0
      %s313 = sadd.s32 %s312, 1
      %s314 = scalar_select %p311, %s312, %s313
      %p317 = pneg %p311
      %p318 = scmp.eq.s32.totalorder %s40, 3
      %p319 = por %p317, %p318
      %p320 = scmp.ne.s32.totalorder %s312, %s315
      %p321 = scmp.eq.s32.totalorder %s40, 0
      %p322 = por %p320, %p321
      %p323 = scmp.ne.s32.totalorder %s312, %s315
      %p324 = scmp.eq.s32.totalorder %s45, 3
      %p325 = por %p323, %p324
      %p326 = scmp.ne.s32.totalorder %s315, %s316
      %p327 = scmp.eq.s32.totalorder %s45, 0
      %p328 = por %p326, %p327
      %p329 = scmp.ne.s32.totalorder %s315, %s316
      %p330 = scmp.eq.s32.totalorder %s46, 3
      %p331 = por %p329, %p330
      %p333 = scmp.ne.s32.totalorder %s316, %s332
      %p334 = scmp.eq.s32.totalorder %s46, 0
      %p335 = por %p333, %p334
      %s336 = ssub.s32 %s48, %s55
      %p337 = scmp.eq.s32.totalorder %s336, 0
      %s339 = sadd.s32 %s338, 1
      %s340 = scalar_select %p337, %s338, %s339
      %p343 = pneg %p337
      %p344 = scmp.eq.s32.totalorder %s40, 3
      %p345 = por %p343, %p344
      %p346 = scmp.ne.s32.totalorder %s338, %s341
      %p347 = scmp.eq.s32.totalorder %s40, 0
      %p348 = por %p346, %p347
      %p349 = scmp.ne.s32.totalorder %s338, %s341
      %p350 = scmp.eq.s32.totalorder %s45, 3
      %p351 = por %p349, %p350
      %p352 = scmp.ne.s32.totalorder %s341, %s342
      %p353 = scmp.eq.s32.totalorder %s45, 0
      %p354 = por %p352, %p353
      %p355 = scmp.ne.s32.totalorder %s341, %s342
      %p356 = scmp.eq.s32.totalorder %s46, 3
      %p357 = por %p355, %p356
      %p359 = scmp.ne.s32.totalorder %s342, %s358
      %p360 = scmp.eq.s32.totalorder %s46, 0
      %p361 = por %p359, %p360
      %s362 = ssub.s32 %s48, %s55
      %p363 = scmp.eq.s32.totalorder %s362, 0
      %s365 = sadd.s32 %s364, 1
      %s366 = scalar_select %p363, %s364, %s365
      %p369 = pneg %p363
      %p370 = scmp.eq.s32.totalorder %s40, 3
      %p371 = por %p369, %p370
      %p372 = scmp.ne.s32.totalorder %s364, %s367
      %p373 = scmp.eq.s32.totalorder %s40, 0
      %p374 = por %p372, %p373
      %p375 = scmp.ne.s32.totalorder %s364, %s367
      %p376 = scmp.eq.s32.totalorder %s45, 3
      %p377 = por %p375, %p376
      %p378 = scmp.ne.s32.totalorder %s367, %s368
      %p379 = scmp.eq.s32.totalorder %s45, 0
      %p380 = por %p378, %p379
      %p381 = scmp.ne.s32.totalorder %s367, %s368
      %p382 = scmp.eq.s32.totalorder %s46, 3
      %p383 = por %p381, %p382
      %p385 = scmp.ne.s32.totalorder %s368, %s384
      %p386 = scmp.eq.s32.totalorder %s46, 0
      %p387 = por %p385, %p386
      %s388 = ssub.s32 %s48, %s55
      %p389 = scmp.eq.s32.totalorder %s388, 0
      %s391 = sadd.s32 %s390, 1
      %s392 = scalar_select %p389, %s390, %s391
      %p395 = pneg %p389
      %p396 = scmp.eq.s32.totalorder %s40, 3
      %p397 = por %p395, %p396
      %p398 = scmp.ne.s32.totalorder %s390, %s393
      %p399 = scmp.eq.s32.totalorder %s40, 0
      %p400 = por %p398, %p399
      %p401 = scmp.ne.s32.totalorder %s390, %s393
      %p402 = scmp.eq.s32.totalorder %s45, 3
      %p403 = por %p401, %p402
      %p404 = scmp.ne.s32.totalorder %s393, %s394
      %p405 = scmp.eq.s32.totalorder %s45, 0
      %p406 = por %p404, %p405
      %p407 = scmp.ne.s32.totalorder %s393, %s394
      %p408 = scmp.eq.s32.totalorder %s46, 3
      %p409 = por %p407, %p408
      %p411 = scmp.ne.s32.totalorder %s394, %s410
      %p412 = scmp.eq.s32.totalorder %s46, 0
      %p413 = por %p411, %p412
      %s414 = ssub.s32 %s48, %s55
      %p415 = scmp.eq.s32.totalorder %s414, 0
      %s417 = sadd.s32 %s416, 1
      %s418 = scalar_select %p415, %s416, %s417
      %p421 = pneg %p415
      %p422 = scmp.eq.s32.totalorder %s40, 3
      %p423 = por %p421, %p422
      %p424 = scmp.ne.s32.totalorder %s416, %s419
      %p425 = scmp.eq.s32.totalorder %s40, 0
      %p426 = por %p424, %p425
      %p427 = scmp.ne.s32.totalorder %s416, %s419
      %p428 = scmp.eq.s32.totalorder %s45, 3
      %p429 = por %p427, %p428
      %p430 = scmp.ne.s32.totalorder %s419, %s420
      %p431 = scmp.eq.s32.totalorder %s45, 0
      %p432 = por %p430, %p431
      %p433 = scmp.ne.s32.totalorder %s419, %s420
      %p434 = scmp.eq.s32.totalorder %s46, 3
      %p435 = por %p433, %p434
      %p437 = scmp.ne.s32.totalorder %s420, %s436
      %p438 = scmp.eq.s32.totalorder %s46, 0
      %p439 = por %p437, %p438
      %s440 = ssub.s32 %s48, %s55
      %p441 = scmp.eq.s32.totalorder %s440, 0
      %s443 = sadd.s32 %s442, 1
      %s444 = scalar_select %p441, %s442, %s443
      %p447 = pneg %p441
      %p448 = scmp.eq.s32.totalorder %s40, 3
      %p449 = por %p447, %p448
      %p450 = scmp.ne.s32.totalorder %s442, %s445
      %p451 = scmp.eq.s32.totalorder %s40, 0
      %p452 = por %p450, %p451
      %p453 = scmp.ne.s32.totalorder %s442, %s445
      %p454 = scmp.eq.s32.totalorder %s45, 3
      %p455 = por %p453, %p454
      %p456 = scmp.ne.s32.totalorder %s445, %s446
      %p457 = scmp.eq.s32.totalorder %s45, 0
      %p458 = por %p456, %p457
      %p459 = scmp.ne.s32.totalorder %s445, %s446
      %p460 = scmp.eq.s32.totalorder %s46, 3
      %p461 = por %p459, %p460
      %p463 = scmp.ne.s32.totalorder %s446, %s462
      %p464 = scmp.eq.s32.totalorder %s46, 0
      %p465 = por %p463, %p464
      %s467 = sadd.s32 %s466, 1
      %p470 = scmp.eq.s32.totalorder %s40, 3
      %p471 = scmp.ne.s32.totalorder %s466, %s468
      %p472 = scmp.eq.s32.totalorder %s40, 0
      %p473 = por %p471, %p472
      %p474 = scmp.ne.s32.totalorder %s466, %s468
      %p475 = scmp.eq.s32.totalorder %s45, 3
      %p476 = por %p474, %p475
      %p477 = scmp.ne.s32.totalorder %s468, %s469
      %p478 = scmp.eq.s32.totalorder %s45, 0
      %p479 = por %p477, %p478
      %p480 = scmp.ne.s32.totalorder %s468, %s469
      %p481 = scmp.eq.s32.totalorder %s46, 3
      %p482 = por %p480, %p481
      %p484 = scmp.ne.s32.totalorder %s469, %s483
      %p485 = scmp.eq.s32.totalorder %s46, 0
      %p486 = por %p484, %p485
      %s488 = sadd.s32 %s487, 1
      %p491 = scmp.eq.s32.totalorder %s40, 3
      %p492 = scmp.ne.s32.totalorder %s487, %s489
      %p493 = scmp.eq.s32.totalorder %s40, 0
      %p494 = por %p492, %p493
      %p495 = scmp.ne.s32.totalorder %s487, %s489
      %p496 = scmp.eq.s32.totalorder %s45, 3
      %p497 = por %p495, %p496
      %p498 = scmp.ne.s32.totalorder %s489, %s490
      %p499 = scmp.eq.s32.totalorder %s45, 0
      %p500 = por %p498, %p499
      %p501 = scmp.ne.s32.totalorder %s489, %s490
      %p502 = scmp.eq.s32.totalorder %s46, 3
      %p503 = por %p501, %p502
      %p505 = scmp.ne.s32.totalorder %s490, %s504
      %p506 = scmp.eq.s32.totalorder %s46, 0
      %p507 = por %p505, %p506
      %s508 = ssub.s32 %s48, %s55
      %s509 = ssub.s32 %s47, %s59
      %s510 = sor.u32 %s508, %s509
      %p511 = scmp.eq.s32.totalorder %s510, 0
      %s513 = sadd.s32 %s512, 1
      %s514 = scalar_select %p511, %s512, %s513
      %p517 = pneg %p511
      %p518 = scmp.eq.s32.totalorder %s40, 3
      %p519 = por %p517, %p518
      %p520 = scmp.ne.s32.totalorder %s512, %s515
      %p521 = scmp.eq.s32.totalorder %s40, 0
      %p522 = por %p520, %p521
      %p523 = scmp.ne.s32.totalorder %s512, %s515
      %p524 = scmp.eq.s32.totalorder %s45, 3
      %p525 = por %p523, %p524
      %p526 = scmp.ne.s32.totalorder %s515, %s516
      %p527 = scmp.eq.s32.totalorder %s45, 0
      %p528 = por %p526, %p527
      %p529 = scmp.ne.s32.totalorder %s515, %s516
      %p530 = scmp.eq.s32.totalorder %s46, 3
      %p531 = por %p529, %p530
      %p533 = scmp.ne.s32.totalorder %s516, %s532
      %p534 = scmp.eq.s32.totalorder %s46, 0
      %p535 = por %p533, %p534
      %s536 = ssub.s32 %s47, %s59
      %p537 = scmp.eq.s32.totalorder %s536, 0
      %s539 = sadd.s32 %s538, 1
      %s540 = scalar_select %p537, %s538, %s539
      %p543 = pneg %p537
      %p544 = scmp.eq.s32.totalorder %s40, 3
      %p545 = por %p543, %p544
      %p546 = scmp.ne.s32.totalorder %s538, %s541
      %p547 = scmp.eq.s32.totalorder %s40, 0
      %p548 = por %p546, %p547
      %p549 = scmp.ne.s32.totalorder %s538, %s541
      %p550 = scmp.eq.s32.totalorder %s45, 3
      %p551 = por %p549, %p550
      %p552 = scmp.ne.s32.totalorder %s541, %s542
      %p553 = scmp.eq.s32.totalorder %s45, 0
      %p554 = por %p552, %p553
      %p555 = scmp.ne.s32.totalorder %s541, %s542
      %p556 = scmp.eq.s32.totalorder %s46, 3
      %p557 = por %p555, %p556
      %p559 = scmp.ne.s32.totalorder %s542, %s558
      %p560 = scmp.eq.s32.totalorder %s46, 0
      %p561 = por %p559, %p560
      %p562 = scmp.le.s32.totalorder 1, %s40
      %p563 = scmp.lt.s32.totalorder %s40, 5
      %p564 = pnand %p562, %p563
      %p565 = pneg %p564
      // Predicated region
      $region9: #{bert_forward.1} parent=5 // pred_check
        _
      $region10: #{bert_forward.1} parent=5 // pred_check_branch
        %567 = sbr.rel (%p564) target = $region12
      $region11: #{bert_forward.1} parent=5 // pred_region
        %s568 = ssub.s32 %s40, 1
        // Predicated region
        $region13: #{bert_forward.1} parent=11 // pred_check
          %p569 = pneg %p125
        $region14: #{bert_forward.1} parent=11 // pred_check_branch
          %571 = sbr.rel (%p569) target = $region16
        $region15: #{bert_forward.1} parent=11 // pred_region
          %s573 = ssub.s32 16, 16
          %574 = vsyncadd [#allocation8], %s573
          %s576 = sshll.u32 [#allocation9], 4
          %s577 = int_to_ptr.vmem [resolvable:$true] %s576
          %579 = dma.hbm_to_vmem [thread:$0]  %s2, 16, %s577, [#allocation8]
        $region16: #{bert_forward.1} parent=11 // pred_fallthru
          _
        // Predicated region
        $region17: #{bert_forward.1} parent=11 // pred_check
          %p580 = pneg %p146
        $region18: #{bert_forward.1} parent=11 // pred_check_branch
          %582 = sbr.rel (%p580) target = $region20
        $region19: #{bert_forward.1} parent=11 // pred_region
          %s584 = ssub.s32 16, 16
          %585 = vsyncadd [#allocation11], %s584
          %s587 = sshll.u32 [#allocation10], 4
          %s588 = int_to_ptr.vmem [resolvable:$true] %s587
          %590 = dma.hbm_to_vmem [thread:$0]  %s3, 16, %s588, [#allocation11]
        $region20: #{bert_forward.1} parent=11 // pred_fallthru
          _
        // Predicated region
        $region21: #{bert_forward.1} parent=11 // pred_check
          %p591 = pneg %p479
        $region22: #{bert_forward.1} parent=11 // pred_check_branch
          %593 = sbr.rel (%p591) target = $region24
        $region23: #{bert_forward.1} parent=11 // pred_region
          %s595 = ssub.s32 256, 256
          %596 = vsyncadd [#allocation11], %s595
          %s597 = sshll.u32 [#allocation24], 4
          %s598 = int_to_ptr.vmem [resolvable:$true] %s597
          %603 = dma.hbm_to_vmem [thread:$0]  %s16, 256, %s598, [#allocation11], 64, 64, 4
        $region24: #{bert_forward.1} parent=11 // pred_fallthru
          _
        // Predicated region
        $region25: #{bert_forward.1} parent=11 // pred_check
          %p604 = pneg %p500
        $region26: #{bert_forward.1} parent=11 // pred_check_branch
          %606 = sbr.rel (%p604) target = $region28
        $region27: #{bert_forward.1} parent=11 // pred_region
          %s608 = ssub.s32 16, 16
          %609 = vsyncadd [#allocation26], %s608
          %s611 = sshll.u32 [#allocation25], 4
          %s612 = int_to_ptr.vmem [resolvable:$true] %s611
          %614 = dma.hbm_to_vmem [thread:$0]  %s17, 16, %s612, [#allocation26]
        $region28: #{bert_forward.1} parent=11 // pred_fallthru
          _
      $region12: #{bert_forward.1} parent=5 // pred_fallthru
        _
      %p615 = scmp.lt.s32.totalorder %s40, 4
      // Predicated region
      $region29: #{bert_forward.1} parent=5 // pred_check
        %p616 = pneg %p615
      $region30: #{bert_forward.1} parent=5 // pred_check_branch
        %618 = sbr.rel (%p616) target = $region32
      $region31: #{bert_forward.1} parent=5 // pred_region
        // Predicated region
        $region33: #{bert_forward.1} parent=31 // pred_check
          %p619 = pneg %p72
        $region34: #{bert_forward.1} parent=31 // pred_check_branch
          %621 = sbr.rel (%p619) target = $region36
        $region35: #{bert_forward.1} parent=31 // pred_region
          %s622 = sand.u32 %s40, 1
          %s623 = scalar_lea.sflag [#allocation5], %s622
          %s624 = sand.u32 %s62, 1
          %s625 = smul.addr %s624, 8
          %s626 = scalar_lea.vmem [#allocation4], %s625
          %s628 = ssub.s32 128, 128
          %629 = vsyncadd %s623, %s628
          %s630 = smul.addr %s47, 128
          %s631 = scalar_lea.hbm %s0, %s630
          %s633 = sshll.u32 %s626, 4
          %s634 = int_to_ptr.vmem [resolvable:$true] %s633
          %636 = dma.hbm_to_vmem [thread:$0]  %s631, 128, %s634, %s623
        $region36: #{bert_forward.1} parent=31 // pred_fallthru
          _
        // Predicated region
        $region37: #{bert_forward.1} parent=31 // pred_check
          %p637 = pneg %p98
        $region38: #{bert_forward.1} parent=31 // pred_check_branch
          %639 = sbr.rel (%p637) target = $region40
        $region39: #{bert_forward.1} parent=31 // pred_region
          %s640 = sand.u32 %s40, 1
          %s641 = scalar_lea.sflag [#allocation8], %s640
          %s642 = sand.u32 %s88, 1
          %s643 = scalar_lea.vmem [#allocation7], %s642
          %s645 = ssub.s32 16, 16
          %646 = vsyncadd %s641, %s645
          %s647 = smul.addr %s47, 16
          %s648 = scalar_lea.hbm %s1, %s647
          %s650 = sshll.u32 %s643, 4
          %s651 = int_to_ptr.vmem [resolvable:$true] %s650
          %653 = dma.hbm_to_vmem [thread:$0]  %s648, 16, %s651, %s641
        $region40: #{bert_forward.1} parent=31 // pred_fallthru
          _
        // Predicated region
        $region41: #{bert_forward.1} parent=31 // pred_check
          %p654 = pneg %p166
        $region42: #{bert_forward.1} parent=31 // pred_check_branch
          %656 = sbr.rel (%p654) target = $region44
        $region43: #{bert_forward.1} parent=31 // pred_region
          %s657 = sand.u32 %s40, 1
          %s658 = scalar_lea.sflag [#allocation5], %s657
          %s659 = sand.u32 %s156, 1
          %s660 = smul.addr %s659, 16
          %s661 = scalar_lea.vmem [#allocation12], %s660
          %s663 = ssub.s32 256, 256
          %664 = vsyncadd %s658, %s663
          %s665 = smul.addr %s48, 4
          %s666 = smul.addr %s665, 64
          %s667 = scalar_lea.hbm %s4, %s666
          %s668 = sshll.u32 %s661, 4
          %s669 = int_to_ptr.vmem [resolvable:$true] %s668
          %674 = dma.hbm_to_vmem [thread:$0]  %s667, 256, %s669, %s658, 64, 64, 4
        $region44: #{bert_forward.1} parent=31 // pred_fallthru
          _
        // Predicated region
        $region45: #{bert_forward.1} parent=31 // pred_check
          %p675 = pneg %p192
        $region46: #{bert_forward.1} parent=31 // pred_check_branch
          %677 = sbr.rel (%p675) target = $region48
        $region47: #{bert_forward.1} parent=31 // pred_region
          %s678 = sand.u32 %s40, 1
          %s679 = scalar_lea.sflag [#allocation8], %s678
          %s680 = sand.u32 %s182, 1
          %s681 = scalar_lea.vmem [#allocation13], %s680
          %s683 = ssub.s32 16, 16
          %684 = vsyncadd %s679, %s683
          %s685 = smul.addr %s48, 16
          %s686 = scalar_lea.hbm %s5, %s685
          %s688 = sshll.u32 %s681, 4
          %s689 = int_to_ptr.vmem [resolvable:$true] %s688
          %691 = dma.hbm_to_vmem [thread:$0]  %s686, 16, %s689, %s679
        $region48: #{bert_forward.1} parent=31 // pred_fallthru
          _
        // Predicated region
        $region49: #{bert_forward.1} parent=31 // pred_check
          %p692 = pneg %p218
        $region50: #{bert_forward.1} parent=31 // pred_check_branch
          %694 = sbr.rel (%p692) target = $region52
        $region51: #{bert_forward.1} parent=31 // pred_region
          %s695 = sand.u32 %s40, 1
          %s696 = scalar_lea.sflag [#allocation5], %s695
          %s697 = sand.u32 %s208, 1
          %s698 = smul.addr %s697, 16
          %s699 = scalar_lea.vmem [#allocation14], %s698
          %s701 = ssub.s32 256, 256
          %702 = vsyncadd %s696, %s701
          %s703 = smul.addr %s48, 4
          %s704 = smul.addr %s703, 64
          %s705 = scalar_lea.hbm %s6, %s704
          %s706 = sshll.u32 %s699, 4
          %s707 = int_to_ptr.vmem [resolvable:$true] %s706
          %712 = dma.hbm_to_vmem [thread:$0]  %s705, 256, %s707, %s696, 64, 64, 4
        $region52: #{bert_forward.1} parent=31 // pred_fallthru
          _
        // Predicated region
        $region53: #{bert_forward.1} parent=31 // pred_check
          %p713 = pneg %p244
        $region54: #{bert_forward.1} parent=31 // pred_check_branch
          %715 = sbr.rel (%p713) target = $region56
        $region55: #{bert_forward.1} parent=31 // pred_region
          %s716 = sand.u32 %s40, 1
          %s717 = scalar_lea.sflag [#allocation8], %s716
          %s718 = sand.u32 %s234, 1
          %s719 = scalar_lea.vmem [#allocation15], %s718
          %s721 = ssub.s32 16, 16
          %722 = vsyncadd %s717, %s721
          %s723 = smul.addr %s48, 16
          %s724 = scalar_lea.hbm %s7, %s723
          %s726 = sshll.u32 %s719, 4
          %s727 = int_to_ptr.vmem [resolvable:$true] %s726
          %729 = dma.hbm_to_vmem [thread:$0]  %s724, 16, %s727, %s717
        $region56: #{bert_forward.1} parent=31 // pred_fallthru
          _
        // Predicated region
        $region57: #{bert_forward.1} parent=31 // pred_check
          %p730 = pneg %p270
        $region58: #{bert_forward.1} parent=31 // pred_check_branch
          %732 = sbr.rel (%p730) target = $region60
        $region59: #{bert_forward.1} parent=31 // pred_region
          %s733 = sand.u32 %s40, 1
          %s734 = scalar_lea.sflag [#allocation5], %s733
          %s735 = sand.u32 %s260, 1
          %s736 = scalar_lea.vmem [#allocation16], %s735
          %s738 = ssub.s32 16, 16
          %739 = vsyncadd %s734, %s738
          %s740 = smul.addr %s48, 16
          %s741 = scalar_lea.hbm %s8, %s740
          %s743 = sshll.u32 %s736, 4
          %s744 = int_to_ptr.vmem [resolvable:$true] %s743
          %746 = dma.hbm_to_vmem [thread:$0]  %s741, 16, %s744, %s734
        $region60: #{bert_forward.1} parent=31 // pred_fallthru
          _
        // Predicated region
        $region61: #{bert_forward.1} parent=31 // pred_check
          %p747 = pneg %p296
        $region62: #{bert_forward.1} parent=31 // pred_check_branch
          %749 = sbr.rel (%p747) target = $region64
        $region63: #{bert_forward.1} parent=31 // pred_region
          %s750 = sand.u32 %s40, 1
          %s751 = scalar_lea.sflag [#allocation8], %s750
          %s752 = sand.u32 %s286, 1
          %s753 = scalar_lea.vmem [#allocation17], %s752
          %s755 = ssub.s32 16, 16
          %756 = vsyncadd %s751, %s755
          %s757 = smul.addr %s48, 16
          %s758 = scalar_lea.hbm %s9, %s757
          %s760 = sshll.u32 %s753, 4
          %s761 = int_to_ptr.vmem [resolvable:$true] %s760
          %763 = dma.hbm_to_vmem [thread:$0]  %s758, 16, %s761, %s751
        $region64: #{bert_forward.1} parent=31 // pred_fallthru
          _
        // Predicated region
        $region65: #{bert_forward.1} parent=31 // pred_check
          %p764 = pneg %p322
        $region66: #{bert_forward.1} parent=31 // pred_check_branch
          %766 = sbr.rel (%p764) target = $region68
        $region67: #{bert_forward.1} parent=31 // pred_region
          %s767 = sand.u32 %s40, 1
          %s768 = scalar_lea.sflag [#allocation5], %s767
          %s769 = sand.u32 %s312, 1
          %s770 = smul.addr %s769, 16
          %s771 = scalar_lea.vmem [#allocation18], %s770
          %s773 = ssub.s32 256, 256
          %774 = vsyncadd %s768, %s773
          %s775 = smul.addr %s48, 4
          %s776 = smul.addr %s775, 64
          %s777 = scalar_lea.hbm %s10, %s776
          %s778 = sshll.u32 %s771, 4
          %s779 = int_to_ptr.vmem [resolvable:$true] %s778
          %784 = dma.hbm_to_vmem [thread:$0]  %s777, 256, %s779, %s768, 64, 64, 4
        $region68: #{bert_forward.1} parent=31 // pred_fallthru
          _
        // Predicated region
        $region69: #{bert_forward.1} parent=31 // pred_check
          %p785 = pneg %p348
        $region70: #{bert_forward.1} parent=31 // pred_check_branch
          %787 = sbr.rel (%p785) target = $region72
        $region71: #{bert_forward.1} parent=31 // pred_region
          %s788 = sand.u32 %s40, 1
          %s789 = scalar_lea.sflag [#allocation8], %s788
          %s790 = sand.u32 %s338, 1
          %s791 = scalar_lea.vmem [#allocation19], %s790
          %s793 = ssub.s32 16, 16
          %794 = vsyncadd %s789, %s793
          %s795 = smul.addr %s48, 16
          %s796 = scalar_lea.hbm %s11, %s795
          %s798 = sshll.u32 %s791, 4
          %s799 = int_to_ptr.vmem [resolvable:$true] %s798
          %801 = dma.hbm_to_vmem [thread:$0]  %s796, 16, %s799, %s789
        $region72: #{bert_forward.1} parent=31 // pred_fallthru
          _
        // Predicated region
        $region73: #{bert_forward.1} parent=31 // pred_check
          %p802 = pneg %p374
        $region74: #{bert_forward.1} parent=31 // pred_check_branch
          %804 = sbr.rel (%p802) target = $region76
        $region75: #{bert_forward.1} parent=31 // pred_region
          %s805 = sand.u32 %s40, 1
          %s806 = scalar_lea.sflag [#allocation5], %s805
          %s807 = sand.u32 %s364, 1
          %s808 = smul.addr %s807, 32
          %s809 = scalar_lea.vmem [#allocation20], %s808
          %s811 = ssub.s32 512, 512
          %812 = vsyncadd %s806, %s811
          %s813 = smul.addr %s48, 8
          %s814 = smul.addr %s813, 64
          %s815 = scalar_lea.hbm %s12, %s814
          %s816 = sshll.u32 %s809, 4
          %s817 = int_to_ptr.vmem [resolvable:$true] %s816
          %822 = dma.hbm_to_vmem [thread:$0]  %s815, 512, %s817, %s806, 64, 64, 4
        $region76: #{bert_forward.1} parent=31 // pred_fallthru
          _
        // Predicated region
        $region77: #{bert_forward.1} parent=31 // pred_check
          %p823 = pneg %p400
        $region78: #{bert_forward.1} parent=31 // pred_check_branch
          %825 = sbr.rel (%p823) target = $region80
        $region79: #{bert_forward.1} parent=31 // pred_region
          %s826 = sand.u32 %s40, 1
          %s827 = scalar_lea.sflag [#allocation8], %s826
          %s828 = sand.u32 %s390, 1
          %s829 = scalar_lea.vmem [#allocation21], %s828
          %s831 = ssub.s32 16, 16
          %832 = vsyncadd %s827, %s831
          %s833 = smul.addr %s48, 16
          %s834 = scalar_lea.hbm %s13, %s833
          %s836 = sshll.u32 %s829, 4
          %s837 = int_to_ptr.vmem [resolvable:$true] %s836
          %839 = dma.hbm_to_vmem [thread:$0]  %s834, 16, %s837, %s827
        $region80: #{bert_forward.1} parent=31 // pred_fallthru
          _
        // Predicated region
        $region81: #{bert_forward.1} parent=31 // pred_check
          %p840 = pneg %p426
        $region82: #{bert_forward.1} parent=31 // pred_check_branch
          %842 = sbr.rel (%p840) target = $region84
        $region83: #{bert_forward.1} parent=31 // pred_region
          %s843 = sand.u32 %s40, 1
          %s844 = scalar_lea.sflag [#allocation5], %s843
          %s845 = sand.u32 %s416, 1
          %s846 = scalar_lea.vmem [#allocation22], %s845
          %s848 = ssub.s32 16, 16
          %849 = vsyncadd %s844, %s848
          %s850 = smul.addr %s48, 16
          %s851 = scalar_lea.hbm %s14, %s850
          %s853 = sshll.u32 %s846, 4
          %s854 = int_to_ptr.vmem [resolvable:$true] %s853
          %856 = dma.hbm_to_vmem [thread:$0]  %s851, 16, %s854, %s844
        $region84: #{bert_forward.1} parent=31 // pred_fallthru
          _
        // Predicated region
        $region85: #{bert_forward.1} parent=31 // pred_check
          %p857 = pneg %p452
        $region86: #{bert_forward.1} parent=31 // pred_check_branch
          %859 = sbr.rel (%p857) target = $region88
        $region87: #{bert_forward.1} parent=31 // pred_region
          %s860 = sand.u32 %s40, 1
          %s861 = scalar_lea.sflag [#allocation8], %s860
          %s862 = sand.u32 %s442, 1
          %s863 = scalar_lea.vmem [#allocation23], %s862
          %s865 = ssub.s32 16, 16
          %866 = vsyncadd %s861, %s865
          %s867 = smul.addr %s48, 16
          %s868 = scalar_lea.hbm %s15, %s867
          %s870 = sshll.u32 %s863, 4
          %s871 = int_to_ptr.vmem [resolvable:$true] %s870
          %873 = dma.hbm_to_vmem [thread:$0]  %s868, 16, %s871, %s861
        $region88: #{bert_forward.1} parent=31 // pred_fallthru
          _
      $region32: #{bert_forward.1} parent=5 // pred_fallthru
        _
      %p874 = scmp.le.s32.totalorder 1, %s40
      %p875 = scmp.lt.s32.totalorder %s40, 5
      %p876 = pnand %p874, %p875
      %p877 = pneg %p876
      // Predicated region
      $region89: #{bert_forward.1} parent=5 // pred_check
        _
      $region90: #{bert_forward.1} parent=5 // pred_check_branch
        %879 = sbr.rel (%p876) target = $region92
      $region91: #{bert_forward.1} parent=5 // pred_region
        %s880 = ssub.s32 %s40, 1
        %s881 = sand.u32 %s45, 1
        %s882 = scalar_lea.sflag [#allocation5], %s881
        %s883 = sand.u32 %s65, 1
        %s884 = smul.addr %s883, 8
        %s885 = scalar_lea.vmem [#allocation4], %s884
        // Predicated region
        $region93: #{bert_forward.1} parent=91 // pred_check
          %p886 = pneg %p78
        $region94: #{bert_forward.1} parent=91 // pred_check_branch
          %888 = sbr.rel (%p886) target = $region96
        $region95: #{bert_forward.1} parent=91 // pred_region
          %889 = dma.done %s882, 128
        $region96: #{bert_forward.1} parent=91 // pred_fallthru
          _
        %s890 = sand.u32 %s45, 1
        %s891 = scalar_lea.sflag [#allocation8], %s890
        %s892 = sand.u32 %s91, 1
        %s893 = scalar_lea.vmem [#allocation7], %s892
        // Predicated region
        $region97: #{bert_forward.1} parent=91 // pred_check
          %p894 = pneg %p104
        $region98: #{bert_forward.1} parent=91 // pred_check_branch
          %896 = sbr.rel (%p894) target = $region100
        $region99: #{bert_forward.1} parent=91 // pred_region
          %897 = dma.done %s891, 16
        $region100: #{bert_forward.1} parent=91 // pred_fallthru
          _
        // Predicated region
        $region101: #{bert_forward.1} parent=91 // pred_check
          %p898 = pneg %p125
        $region102: #{bert_forward.1} parent=91 // pred_check_branch
          %900 = sbr.rel (%p898) target = $region104
        $region103: #{bert_forward.1} parent=91 // pred_region
          %901 = dma.done [#allocation8], 16
        $region104: #{bert_forward.1} parent=91 // pred_fallthru
          _
        // Predicated region
        $region105: #{bert_forward.1} parent=91 // pred_check
          %p902 = pneg %p146
        $region106: #{bert_forward.1} parent=91 // pred_check_branch
          %904 = sbr.rel (%p902) target = $region108
        $region107: #{bert_forward.1} parent=91 // pred_region
          %905 = dma.done [#allocation11], 16
        $region108: #{bert_forward.1} parent=91 // pred_fallthru
          _
        %s906 = sand.u32 %s45, 1
        %s907 = scalar_lea.sflag [#allocation5], %s906
        %s908 = sand.u32 %s159, 1
        %s909 = smul.addr %s908, 16
        %s910 = scalar_lea.vmem [#allocation12], %s909
        // Predicated region
        $region109: #{bert_forward.1} parent=91 // pred_check
          %p911 = pneg %p172
        $region110: #{bert_forward.1} parent=91 // pred_check_branch
          %913 = sbr.rel (%p911) target = $region112
        $region111: #{bert_forward.1} parent=91 // pred_region
          %914 = dma.done %s907, 256
        $region112: #{bert_forward.1} parent=91 // pred_fallthru
          _
        %s915 = sand.u32 %s45, 1
        %s916 = scalar_lea.sflag [#allocation8], %s915
        %s917 = sand.u32 %s185, 1
        %s918 = scalar_lea.vmem [#allocation13], %s917
        // Predicated region
        $region113: #{bert_forward.1} parent=91 // pred_check
          %p919 = pneg %p198
        $region114: #{bert_forward.1} parent=91 // pred_check_branch
          %921 = sbr.rel (%p919) target = $region116
        $region115: #{bert_forward.1} parent=91 // pred_region
          %922 = dma.done %s916, 16
        $region116: #{bert_forward.1} parent=91 // pred_fallthru
          _
        %s923 = sand.u32 %s45, 1
        %s924 = scalar_lea.sflag [#allocation5], %s923
        %s925 = sand.u32 %s211, 1
        %s926 = smul.addr %s925, 16
        %s927 = scalar_lea.vmem [#allocation14], %s926
        // Predicated region
        $region117: #{bert_forward.1} parent=91 // pred_check
          %p928 = pneg %p224
        $region118: #{bert_forward.1} parent=91 // pred_check_branch
          %930 = sbr.rel (%p928) target = $region120
        $region119: #{bert_forward.1} parent=91 // pred_region
          %931 = dma.done %s924, 256
        $region120: #{bert_forward.1} parent=91 // pred_fallthru
          _
        %s932 = sand.u32 %s45, 1
        %s933 = scalar_lea.sflag [#allocation8], %s932
        %s934 = sand.u32 %s237, 1
        %s935 = scalar_lea.vmem [#allocation15], %s934
        // Predicated region
        $region121: #{bert_forward.1} parent=91 // pred_check
          %p936 = pneg %p250
        $region122: #{bert_forward.1} parent=91 // pred_check_branch
          %938 = sbr.rel (%p936) target = $region124
        $region123: #{bert_forward.1} parent=91 // pred_region
          %939 = dma.done %s933, 16
        $region124: #{bert_forward.1} parent=91 // pred_fallthru
          _
        %s940 = sand.u32 %s45, 1
        %s941 = scalar_lea.sflag [#allocation5], %s940
        %s942 = sand.u32 %s263, 1
        %s943 = scalar_lea.vmem [#allocation16], %s942
        // Predicated region
        $region125: #{bert_forward.1} parent=91 // pred_check
          %p944 = pneg %p276
        $region126: #{bert_forward.1} parent=91 // pred_check_branch
          %946 = sbr.rel (%p944) target = $region128
        $region127: #{bert_forward.1} parent=91 // pred_region
          %947 = dma.done %s941, 16
        $region128: #{bert_forward.1} parent=91 // pred_fallthru
          _
        %s948 = sand.u32 %s45, 1
        %s949 = scalar_lea.sflag [#allocation8], %s948
        %s950 = sand.u32 %s289, 1
        %s951 = scalar_lea.vmem [#allocation17], %s950
        // Predicated region
        $region129: #{bert_forward.1} parent=91 // pred_check
          %p952 = pneg %p302
        $region130: #{bert_forward.1} parent=91 // pred_check_branch
          %954 = sbr.rel (%p952) target = $region132
        $region131: #{bert_forward.1} parent=91 // pred_region
          %955 = dma.done %s949, 16
        $region132: #{bert_forward.1} parent=91 // pred_fallthru
          _
        %s956 = sand.u32 %s45, 1
        %s957 = scalar_lea.sflag [#allocation5], %s956
        %s958 = sand.u32 %s315, 1
        %s959 = smul.addr %s958, 16
        %s960 = scalar_lea.vmem [#allocation18], %s959
        // Predicated region
        $region133: #{bert_forward.1} parent=91 // pred_check
          %p961 = pneg %p328
        $region134: #{bert_forward.1} parent=91 // pred_check_branch
          %963 = sbr.rel (%p961) target = $region136
        $region135: #{bert_forward.1} parent=91 // pred_region
          %964 = dma.done %s957, 256
        $region136: #{bert_forward.1} parent=91 // pred_fallthru
          _
        %s965 = sand.u32 %s45, 1
        %s966 = scalar_lea.sflag [#allocation8], %s965
        %s967 = sand.u32 %s341, 1
        %s968 = scalar_lea.vmem [#allocation19], %s967
        // Predicated region
        $region137: #{bert_forward.1} parent=91 // pred_check
          %p969 = pneg %p354
        $region138: #{bert_forward.1} parent=91 // pred_check_branch
          %971 = sbr.rel (%p969) target = $region140
        $region139: #{bert_forward.1} parent=91 // pred_region
          %972 = dma.done %s966, 16
        $region140: #{bert_forward.1} parent=91 // pred_fallthru
          _
        %s973 = sand.u32 %s45, 1
        %s974 = scalar_lea.sflag [#allocation5], %s973
        %s975 = sand.u32 %s367, 1
        %s976 = smul.addr %s975, 32
        %s977 = scalar_lea.vmem [#allocation20], %s976
        // Predicated region
        $region141: #{bert_forward.1} parent=91 // pred_check
          %p978 = pneg %p380
        $region142: #{bert_forward.1} parent=91 // pred_check_branch
          %980 = sbr.rel (%p978) target = $region144
        $region143: #{bert_forward.1} parent=91 // pred_region
          %981 = dma.done %s974, 512
        $region144: #{bert_forward.1} parent=91 // pred_fallthru
          _
        %s982 = sand.u32 %s45, 1
        %s983 = scalar_lea.sflag [#allocation8], %s982
        %s984 = sand.u32 %s393, 1
        %s985 = scalar_lea.vmem [#allocation21], %s984
        // Predicated region
        $region145: #{bert_forward.1} parent=91 // pred_check
          %p986 = pneg %p406
        $region146: #{bert_forward.1} parent=91 // pred_check_branch
          %988 = sbr.rel (%p986) target = $region148
        $region147: #{bert_forward.1} parent=91 // pred_region
          %989 = dma.done %s983, 16
        $region148: #{bert_forward.1} parent=91 // pred_fallthru
          _
        %s990 = sand.u32 %s45, 1
        %s991 = scalar_lea.sflag [#allocation5], %s990
        %s992 = sand.u32 %s419, 1
        %s993 = scalar_lea.vmem [#allocation22], %s992
        // Predicated region
        $region149: #{bert_forward.1} parent=91 // pred_check
          %p994 = pneg %p432
        $region150: #{bert_forward.1} parent=91 // pred_check_branch
          %996 = sbr.rel (%p994) target = $region152
        $region151: #{bert_forward.1} parent=91 // pred_region
          %997 = dma.done %s991, 16
        $region152: #{bert_forward.1} parent=91 // pred_fallthru
          _
        %s998 = sand.u32 %s45, 1
        %s999 = scalar_lea.sflag [#allocation8], %s998
        %s1000 = sand.u32 %s445, 1
        %s1001 = scalar_lea.vmem [#allocation23], %s1000
        // Predicated region
        $region153: #{bert_forward.1} parent=91 // pred_check
          %p1002 = pneg %p458
        $region154: #{bert_forward.1} parent=91 // pred_check_branch
          %1004 = sbr.rel (%p1002) target = $region156
        $region155: #{bert_forward.1} parent=91 // pred_region
          %1005 = dma.done %s999, 16
        $region156: #{bert_forward.1} parent=91 // pred_fallthru
          _
        // Predicated region
        $region157: #{bert_forward.1} parent=91 // pred_check
          %p1006 = pneg %p479
        $region158: #{bert_forward.1} parent=91 // pred_check_branch
          %1008 = sbr.rel (%p1006) target = $region160
        $region159: #{bert_forward.1} parent=91 // pred_region
          %1009 = dma.done [#allocation11], 256
        $region160: #{bert_forward.1} parent=91 // pred_fallthru
          _
        // Predicated region
        $region161: #{bert_forward.1} parent=91 // pred_check
          %p1010 = pneg %p500
        $region162: #{bert_forward.1} parent=91 // pred_check_branch
          %1012 = sbr.rel (%p1010) target = $region164
        $region163: #{bert_forward.1} parent=91 // pred_region
          %1013 = dma.done [#allocation26], 16
        $region164: #{bert_forward.1} parent=91 // pred_fallthru
          _
        %s1014 = sand.u32 %s45, 1
        %s1015 = scalar_lea.sflag [#allocation5], %s1014
        %s1016 = sand.u32 %s65, 1
        %s1017 = smul.addr %s1016, 8
        %s1018 = scalar_lea.vmem [#allocation4], %s1017
        %p1019 = pneg %p78
        %p1020 = pneg %p75
        %s1021 = sand.u32 %s45, 1
        %s1022 = scalar_lea.sflag [#allocation8], %s1021
        %s1023 = sand.u32 %s91, 1
        %s1024 = scalar_lea.vmem [#allocation7], %s1023
        %p1025 = pneg %p104
        %p1026 = pneg %p101
        %p1027 = pneg %p125
        %p1028 = pneg %p122
        %p1029 = pneg %p146
        %p1030 = pneg %p143
        %s1031 = sand.u32 %s45, 1
        %s1032 = scalar_lea.sflag [#allocation5], %s1031
        %s1033 = sand.u32 %s159, 1
        %s1034 = smul.addr %s1033, 16
        %s1035 = scalar_lea.vmem [#allocation12], %s1034
        %p1036 = pneg %p172
        %p1037 = pneg %p169
        %s1038 = sand.u32 %s45, 1
        %s1039 = scalar_lea.sflag [#allocation8], %s1038
        %s1040 = sand.u32 %s185, 1
        %s1041 = scalar_lea.vmem [#allocation13], %s1040
        %p1042 = pneg %p198
        %p1043 = pneg %p195
        %s1044 = sand.u32 %s45, 1
        %s1045 = scalar_lea.sflag [#allocation5], %s1044
        %s1046 = sand.u32 %s211, 1
        %s1047 = smul.addr %s1046, 16
        %s1048 = scalar_lea.vmem [#allocation14], %s1047
        %p1049 = pneg %p224
        %p1050 = pneg %p221
        %s1051 = sand.u32 %s45, 1
        %s1052 = scalar_lea.sflag [#allocation8], %s1051
        %s1053 = sand.u32 %s237, 1
        %s1054 = scalar_lea.vmem [#allocation15], %s1053
        %p1055 = pneg %p250
        %p1056 = pneg %p247
        %s1057 = sand.u32 %s45, 1
        %s1058 = scalar_lea.sflag [#allocation5], %s1057
        %s1059 = sand.u32 %s263, 1
        %s1060 = scalar_lea.vmem [#allocation16], %s1059
        %p1061 = pneg %p276
        %p1062 = pneg %p273
        %s1063 = sand.u32 %s45, 1
        %s1064 = scalar_lea.sflag [#allocation8], %s1063
        %s1065 = sand.u32 %s289, 1
        %s1066 = scalar_lea.vmem [#allocation17], %s1065
        %p1067 = pneg %p302
        %p1068 = pneg %p299
        %s1069 = sand.u32 %s45, 1
        %s1070 = scalar_lea.sflag [#allocation5], %s1069
        %s1071 = sand.u32 %s315, 1
        %s1072 = smul.addr %s1071, 16
        %s1073 = scalar_lea.vmem [#allocation18], %s1072
        %p1074 = pneg %p328
        %p1075 = pneg %p325
        %s1076 = sand.u32 %s45, 1
        %s1077 = scalar_lea.sflag [#allocation8], %s1076
        %s1078 = sand.u32 %s341, 1
        %s1079 = scalar_lea.vmem [#allocation19], %s1078
        %p1080 = pneg %p354
        %p1081 = pneg %p351
        %s1082 = sand.u32 %s45, 1
        %s1083 = scalar_lea.sflag [#allocation5], %s1082
        %s1084 = sand.u32 %s367, 1
        %s1085 = smul.addr %s1084, 32
        %s1086 = scalar_lea.vmem [#allocation20], %s1085
        %p1087 = pneg %p380
        %p1088 = pneg %p377
        %s1089 = sand.u32 %s45, 1
        %s1090 = scalar_lea.sflag [#allocation8], %s1089
        %s1091 = sand.u32 %s393, 1
        %s1092 = scalar_lea.vmem [#allocation21], %s1091
        %p1093 = pneg %p406
        %p1094 = pneg %p403
        %s1095 = sand.u32 %s45, 1
        %s1096 = scalar_lea.sflag [#allocation5], %s1095
        %s1097 = sand.u32 %s419, 1
        %s1098 = scalar_lea.vmem [#allocation22], %s1097
        %p1099 = pneg %p432
        %p1100 = pneg %p429
        %s1101 = sand.u32 %s45, 1
        %s1102 = scalar_lea.sflag [#allocation8], %s1101
        %s1103 = sand.u32 %s445, 1
        %s1104 = scalar_lea.vmem [#allocation23], %s1103
        %p1105 = pneg %p458
        %p1106 = pneg %p455
        %p1107 = pneg %p479
        %p1108 = pneg %p476
        %p1109 = pneg %p500
        %p1110 = pneg %p497
        %p1111 = pneg %p528
        %p1112 = pneg %p525
        %s1113 = sand.u32 %s515, 1
        %s1114 = scalar_lea.sflag [#allocation6], %s1113
        %s1115 = sand.u32 %s515, 1
        %s1116 = smul.addr %s1115, 8
        %s1117 = scalar_lea.vmem [#allocation27], %s1116
        %p1118 = pneg %p554
        %p1119 = pneg %p551
        %s1120 = sand.u32 %s541, 1
        %s1121 = scalar_lea.sflag [#allocation29], %s1120
        %s1122 = sand.u32 %s541, 1
        %s1123 = scalar_lea.vmem [#allocation28], %s1122
        %p1125 = scmp.eq.s32.totalorder %s50, 0
        // Predicated region
        $region165: #{bert_forward.1} parent=91 // pred_check
          %p1126 = pneg %p1125
        $region166: #{bert_forward.1} parent=91 // pred_check_branch
          %1128 = sbr.rel (%p1126) target = $region168
        $region167: #{bert_forward.1} parent=91 // pred_region
          %v1129 = vld [vmem:[%s885] sm:$0xff]
          %v1130 = vld [vmem:[#allocation9] sm:$0x1]
          %v1131 = vld [vmem:[#allocation10] sm:$0x1]
          %vm1132 = vcmask 261120
          %v1133 = vsel %vm1132, %v1129, 0.0
          %1134 = vadd.xlane.f32.xlu0 %v1133
          %v1135 = vpop.xlane.xlu0 %1134
          %v1136 = vrcp.pop 32.0
          %v1137 = vmul.f32 %v1135, %v1136
          %v1138 = vsub.f32 %v1129, %v1137
          %v1139 = vmul.f32 %v1138, %v1138
          %v1140 = vsel %vm1132, %v1139, 0.0
          %1141 = vadd.xlane.f32.xlu0 %v1140
          %v1142 = vpop.xlane.xlu0 %1141
          %v1143 = vmul.f32 %v1142, %v1136
          %v1144 = vadd.f32 %v1143, 1e-12
          %v1145 = vrsqrt.pop %v1144
          %v1146 = vmul.f32 %v1138, %v1145
          %v1148 = vlaneseq
          %v1149 = vshrl.u32 %v1148, 7
          %v1150 = vsub.s32 0, %v1149
          %v1151 = vrot.slane %v1130, %v1150
          %v1153 = vmul.f32 %v1151, %v1146
          %v1155 = vlaneseq
          %v1156 = vshrl.u32 %v1155, 7
          %v1157 = vsub.s32 0, %v1156
          %v1158 = vrot.slane %v1131, %v1157
          %v1160 = vadd.f32 %v1153, %v1158
          %1161 = vst.msk [vmem:[#allocation2] sm:$0xff] %vm1132, %v1160
          %vm1162 = vcmask 253952
          %1163 = vst.msk [vmem:[%s1123] sm:$0x1] %vm1162, 0.0
        $region168: #{bert_forward.1} parent=91 // pred_fallthru
          _
        %v1164 = vld [vmem:[#allocation2] sm:$0xff]
        %v1165 = vld [vmem:[%s893] sm:$0x1]
        %v1166 = vsub.f32 1.0, %v1165
        %v1167 = vmul.f32 %v1166, -10000.0
        %v1169 = vlaneseq
        %v1170 = vshrl.u32 %v1169, 7
        %v1171 = vsub.s32 0, %v1170
        %v1172 = vrot.slane %v1167, %v1171
        %v1174 = vld [vmem:[%s910] sm:$0xf]
        %v1175 = vld [vmem:[%s910 + $0x4] sm:$0xf]
        %v1176 = vld [vmem:[%s910 + $0x8] sm:$0xf]
        %v1177 = vld [vmem:[%s910 + $0xc] sm:$0xf]
        %v1178 = vpack.c.bf16 %v1164, %v1164
        %v1179 = vld [vmem:[%s918] sm:$0x1]
        %v1181 = vlaneseq
        %v1182 = vshrl.u32 %v1181, 7
        %v1183 = vsub.s32 0, %v1182
        %v1184 = vrot.slane %v1179, %v1183
        %v1190 = vunpack.c.l.b16 %v1174
        %v1191 = vunpack.c.l.b16 %v1175
        %v1192 = vunpack.c.l.b16 %v1176
        %v1193 = vunpack.c.l.b16 %v1177
        %v1194 = vpack.c.b16 %v1191, %v1190
        %v1195 = vpack.c.b16 %v1193, %v1192
        %vm1198 = vcmask 261120
        %v1200 = vsel %vm1198, %v1178, 0
        %1202 = vmatprep.subr.bf16.mxu0 0
        %1203 = vmatpush1.bf16.msra.mxu0 %v1194
        %1204 = vmatprep.subr.bf16.mxu0 0
        %1205 = vmatpush1.bf16.msra.mxu0 %v1195
        %1206 = vmatprep.subr.bf16.mxu0 0
        %1207 = vmatpush1.bf16.msra.mxu0 0
        %1208 = vmatprep.subr.bf16.mxu0 0
        %1209 = vmatpush1.bf16.msra.mxu0 0
        %1210 = vmatprep.subr.bf16.mxu0 0
        %1211 = vmatpush1.bf16.msra.mxu0 0
        %1212 = vmatprep.subr.bf16.mxu0 0
        %1213 = vmatpush1.bf16.msra.mxu0 0
        %1214 = vmatprep.subr.bf16.mxu0 0
        %1215 = vmatpush1.bf16.msra.mxu0 0
        %1216 = vmatprep.subr.bf16.mxu0 0
        %1217 = vmatpush1.bf16.msra.mxu0 0
        %1218 = vmatprep.subr.bf16.mxu0 0
        %1219 = vmatpush1.bf16.msra.mxu0 0
        %1220 = vmatprep.subr.bf16.mxu0 0
        %1221 = vmatpush1.bf16.msra.mxu0 0
        %1222 = vmatprep.subr.bf16.mxu0 0
        %1223 = vmatpush1.bf16.msra.mxu0 0
        %1224 = vmatprep.subr.bf16.mxu0 0
        %1225 = vmatpush1.bf16.msra.mxu0 0
        %1226 = vmatprep.subr.bf16.mxu0 0
        %1227 = vmatpush1.bf16.msra.mxu0 0
        %1228 = vmatprep.subr.bf16.mxu0 0
        %1229 = vmatpush1.bf16.msra.mxu0 0
        %1230 = vmatprep.subr.bf16.mxu0 0
        %1231 = vmatpush1.bf16.msra.mxu0 0
        %1232 = vmatprep.subr.bf16.mxu0 0
        %1233 = vmatpush1.bf16.msra.mxu0 0
        %1234 = vmatprep.mubr.bf16.mxu0 0
        %1235 = vmatmul.mubr.bf16.gmra.mrb[0].mxu0 %v1200
        %v1236 = vpop.f32.mrb[0].mxu0
        %v1237 = vadd.f32 %v1184, %v1236
        %v1238 = vpop.f32.mrb[0].mxu0
        %v1239 = vpop.f32.mrb[0].mxu0
        %v1240 = vpop.f32.mrb[0].mxu0
        %1241 = vdwg.mxu0
        %v1242 = vpack.c.bf16 %v1237, %v1237
        %1244 = vrot.lane.b32.xlu0 %v1242, 96
        %v1245 = vpop.permute.xlu0 %1244
        %vm1246 = vcmask 64512
        %v1248 = vsel %vm1246, %v1242, 0
        %v1251 = vsel %vm1246, %v1245, 0
        %1253 = vmatprep.subr.bf16.mxu0 0
        %1254 = vmatpush1.bf16.xpose.msra.mxu0 %v1251
        %1255 = vmatprep.subr.bf16.mxu0 0
        %1256 = vmatpush1.bf16.xpose.msra.mxu0 0
        %1257 = vmatprep.subr.bf16.mxu0 0
        %1258 = vmatpush1.bf16.xpose.msra.mxu0 0
        %1259 = vmatprep.subr.bf16.mxu0 0
        %1260 = vmatpush1.bf16.xpose.msra.mxu0 0
        %1261 = vmatprep.subr.bf16.mxu0 0
        %1262 = vmatpush1.bf16.xpose.msra.mxu0 0
        %1263 = vmatprep.subr.bf16.mxu0 0
        %1264 = vmatpush1.bf16.xpose.msra.mxu0 0
        %1265 = vmatprep.subr.bf16.mxu0 0
        %1266 = vmatpush1.bf16.xpose.msra.mxu0 0
        %1267 = vmatprep.subr.bf16.mxu0 0
        %1268 = vmatpush1.bf16.xpose.msra.mxu0 0
        %1269 = vmatprep.subr.bf16.mxu0 0
        %1270 = vmatpush1.bf16.xpose.msra.mxu0 0
        %1271 = vmatprep.subr.bf16.mxu0 0
        %1272 = vmatpush1.bf16.xpose.msra.mxu0 0
        %1273 = vmatprep.subr.bf16.mxu0 0
        %1274 = vmatpush1.bf16.xpose.msra.mxu0 0
        %1275 = vmatprep.subr.bf16.mxu0 0
        %1276 = vmatpush1.bf16.xpose.msra.mxu0 0
        %1277 = vmatprep.subr.bf16.mxu0 0
        %1278 = vmatpush1.bf16.xpose.msra.mxu0 0
        %1279 = vmatprep.subr.bf16.mxu0 0
        %1280 = vmatpush1.bf16.xpose.msra.mxu0 0
        %1281 = vmatprep.subr.bf16.mxu0 0
        %1282 = vmatpush1.bf16.xpose.msra.mxu0 0
        %1283 = vmatprep.subr.bf16.mxu0 0
        %1284 = vmatpush1.bf16.xpose.msra.mxu0 0
        %1285 = vmatprep.mubr.bf16.mxu0 0
        %1286 = vmatmul.mubr.bf16.gmra.mrb[0].mxu0 %v1248
        %v1287 = vpop.f32.mrb[0].mxu0
        %v1288 = vadd.f32 %v1172, %v1287
        %v1289 = vpop.f32.mrb[0].mxu0
        %v1290 = vpop.f32.mrb[0].mxu0
        %v1291 = vpop.f32.mrb[0].mxu0
        %1292 = vdwg.mxu0
        %v1293 = vsel %vm1246, %v1288, -inf
        %1294 = vmax.xlane.f32.xlu0 %v1293
        %v1295 = vpop.xlane.xlu0 %1294
        %v1296 = vsub.f32 %v1288, %v1295
        %v1297 = vmul.f32 %v1296, 1.442695
        %v1298 = vpow.pop %v1297
        %v1299 = vsel %vm1246, %v1298, 0.0
        %1300 = vadd.xlane.f32.xlu0 %v1299
        %v1301 = vpop.xlane.xlu0 %1300
        %v1302 = vrcp.pop %v1301
        %v1303 = vmul.f32 %v1298, %v1302
        %v1304 = vpack.c.bf16 %v1303, %v1303
        %1305 = vrot.lane.b32.xlu0 %v1242, 64
        %v1306 = vpop.permute.xlu0 %1305
        %v1308 = vsel %vm1246, %v1304, 0
        %vm1310 = vcmask 1043456
        %v1312 = vsel %vm1310, %v1306, 0
        %1314 = vmatprep.subr.bf16.mxu0 0
        %1315 = vmatpush1.bf16.msra.mxu0 %v1312
        %1316 = vmatprep.subr.bf16.mxu0 0
        %1317 = vmatpush1.bf16.msra.mxu0 0
        %1318 = vmatprep.subr.bf16.mxu0 0
        %1319 = vmatpush1.bf16.msra.mxu0 0
        %1320 = vmatprep.subr.bf16.mxu0 0
        %1321 = vmatpush1.bf16.msra.mxu0 0
        %1322 = vmatprep.subr.bf16.mxu0 0
        %1323 = vmatpush1.bf16.msra.mxu0 0
        %1324 = vmatprep.subr.bf16.mxu0 0
        %1325 = vmatpush1.bf16.msra.mxu0 0
        %1326 = vmatprep.subr.bf16.mxu0 0
        %1327 = vmatpush1.bf16.msra.mxu0 0
        %1328 = vmatprep.subr.bf16.mxu0 0
        %1329 = vmatpush1.bf16.msra.mxu0 0
        %1330 = vmatprep.subr.bf16.mxu0 0
        %1331 = vmatpush1.bf16.msra.mxu0 0
        %1332 = vmatprep.subr.bf16.mxu0 0
        %1333 = vmatpush1.bf16.msra.mxu0 0
        %1334 = vmatprep.subr.bf16.mxu0 0
        %1335 = vmatpush1.bf16.msra.mxu0 0
        %1336 = vmatprep.subr.bf16.mxu0 0
        %1337 = vmatpush1.bf16.msra.mxu0 0
        %1338 = vmatprep.subr.bf16.mxu0 0
        %1339 = vmatpush1.bf16.msra.mxu0 0
        %1340 = vmatprep.subr.bf16.mxu0 0
        %1341 = vmatpush1.bf16.msra.mxu0 0
        %1342 = vmatprep.subr.bf16.mxu0 0
        %1343 = vmatpush1.bf16.msra.mxu0 0
        %1344 = vmatprep.subr.bf16.mxu0 0
        %1345 = vmatpush1.bf16.msra.mxu0 0
        %1346 = vmatprep.mubr.bf16.mxu0 0
        %1347 = vmatmul.mubr.bf16.gmra.mrb[0].mxu0 %v1308
        %v1348 = vpop.f32.mrb[0].mxu0
        %v1349 = vadd.f32 0.0, %v1348
        %v1350 = vpop.f32.mrb[0].mxu0
        %v1351 = vpop.f32.mrb[0].mxu0
        %v1352 = vpop.f32.mrb[0].mxu0
        %1353 = vdwg.mxu0
        %1354 = vst.msk [vmem:[#allocation3] sm:$0xff] %vm1246, %v1349
        %1355 = vrot.lane.b32.xlu0 %v1242, 120
        %v1356 = vpop.permute.xlu0 %1355
        %1357 = vrot.lane.b32.xlu0 %v1242, 88
        %v1358 = vpop.permute.xlu0 %1357
        %v1360 = vsel %vm1246, %v1356, 0
        %v1363 = vsel %vm1246, %v1358, 0
        %1365 = vmatprep.subr.bf16.mxu0 0
        %1366 = vmatpush1.bf16.xpose.msra.mxu0 %v1363
        %1367 = vmatprep.subr.bf16.mxu0 0
        %1368 = vmatpush1.bf16.xpose.msra.mxu0 0
        %1369 = vmatprep.subr.bf16.mxu0 0
        %1370 = vmatpush1.bf16.xpose.msra.mxu0 0
        %1371 = vmatprep.subr.bf16.mxu0 0
        %1372 = vmatpush1.bf16.xpose.msra.mxu0 0
        %1373 = vmatprep.subr.bf16.mxu0 0
        %1374 = vmatpush1.bf16.xpose.msra.mxu0 0
        %1375 = vmatprep.subr.bf16.mxu0 0
        %1376 = vmatpush1.bf16.xpose.msra.mxu0 0
        %1377 = vmatprep.subr.bf16.mxu0 0
        %1378 = vmatpush1.bf16.xpose.msra.mxu0 0
        %1379 = vmatprep.subr.bf16.mxu0 0
        %1380 = vmatpush1.bf16.xpose.msra.mxu0 0
        %1381 = vmatprep.subr.bf16.mxu0 0
        %1382 = vmatpush1.bf16.xpose.msra.mxu0 0
        %1383 = vmatprep.subr.bf16.mxu0 0
        %1384 = vmatpush1.bf16.xpose.msra.mxu0 0
        %1385 = vmatprep.subr.bf16.mxu0 0
        %1386 = vmatpush1.bf16.xpose.msra.mxu0 0
        %1387 = vmatprep.subr.bf16.mxu0 0
        %1388 = vmatpush1.bf16.xpose.msra.mxu0 0
        %1389 = vmatprep.subr.bf16.mxu0 0
        %1390 = vmatpush1.bf16.xpose.msra.mxu0 0
        %1391 = vmatprep.subr.bf16.mxu0 0
        %1392 = vmatpush1.bf16.xpose.msra.mxu0 0
        %1393 = vmatprep.subr.bf16.mxu0 0
        %1394 = vmatpush1.bf16.xpose.msra.mxu0 0
        %1395 = vmatprep.subr.bf16.mxu0 0
        %1396 = vmatpush1.bf16.xpose.msra.mxu0 0
        %1397 = vmatprep.mubr.bf16.mxu0 0
        %1398 = vmatmul.mubr.bf16.gmra.mrb[0].mxu0 %v1360
        %v1399 = vpop.f32.mrb[0].mxu0
        %v1400 = vadd.f32 %v1172, %v1399
        %v1401 = vpop.f32.mrb[0].mxu0
        %v1402 = vpop.f32.mrb[0].mxu0
        %v1403 = vpop.f32.mrb[0].mxu0
        %1404 = vdwg.mxu0
        %v1405 = vsel %vm1246, %v1400, -inf
        %1406 = vmax.xlane.f32.xlu0 %v1405
        %v1407 = vpop.xlane.xlu0 %1406
        %v1408 = vsub.f32 %v1400, %v1407
        %v1409 = vmul.f32 %v1408, 1.442695
        %v1410 = vpow.pop %v1409
        %v1411 = vsel %vm1246, %v1410, 0.0
        %1412 = vadd.xlane.f32.xlu0 %v1411
        %v1413 = vpop.xlane.xlu0 %1412
        %v1414 = vrcp.pop %v1413
        %v1415 = vmul.f32 %v1410, %v1414
        %v1416 = vpack.c.bf16 %v1415, %v1415
        %1417 = vrot.lane.b32.xlu0 %v1242, 56
        %v1418 = vpop.permute.xlu0 %1417
        %v1420 = vsel %vm1246, %v1416, 0
        %v1423 = vsel %vm1310, %v1418, 0
        %1425 = vmatprep.subr.bf16.mxu0 0
        %1426 = vmatpush1.bf16.msra.mxu0 %v1423
        %1427 = vmatprep.subr.bf16.mxu0 0
        %1428 = vmatpush1.bf16.msra.mxu0 0
        %1429 = vmatprep.subr.bf16.mxu0 0
        %1430 = vmatpush1.bf16.msra.mxu0 0
        %1431 = vmatprep.subr.bf16.mxu0 0
        %1432 = vmatpush1.bf16.msra.mxu0 0
        %1433 = vmatprep.subr.bf16.mxu0 0
        %1434 = vmatpush1.bf16.msra.mxu0 0
        %1435 = vmatprep.subr.bf16.mxu0 0
        %1436 = vmatpush1.bf16.msra.mxu0 0
        %1437 = vmatprep.subr.bf16.mxu0 0
        %1438 = vmatpush1.bf16.msra.mxu0 0
        %1439 = vmatprep.subr.bf16.mxu0 0
        %1440 = vmatpush1.bf16.msra.mxu0 0
        %1441 = vmatprep.subr.bf16.mxu0 0
        %1442 = vmatpush1.bf16.msra.mxu0 0
        %1443 = vmatprep.subr.bf16.mxu0 0
        %1444 = vmatpush1.bf16.msra.mxu0 0
        %1445 = vmatprep.subr.bf16.mxu0 0
        %1446 = vmatpush1.bf16.msra.mxu0 0
        %1447 = vmatprep.subr.bf16.mxu0 0
        %1448 = vmatpush1.bf16.msra.mxu0 0
        %1449 = vmatprep.subr.bf16.mxu0 0
        %1450 = vmatpush1.bf16.msra.mxu0 0
        %1451 = vmatprep.subr.bf16.mxu0 0
        %1452 = vmatpush1.bf16.msra.mxu0 0
        %1453 = vmatprep.subr.bf16.mxu0 0
        %1454 = vmatpush1.bf16.msra.mxu0 0
        %1455 = vmatprep.subr.bf16.mxu0 0
        %1456 = vmatpush1.bf16.msra.mxu0 0
        %1457 = vmatprep.mubr.bf16.mxu0 0
        %1458 = vmatmul.mubr.bf16.gmra.mrb[0].mxu0 %v1420
        %v1459 = vpop.f32.mrb[0].mxu0
        %v1460 = vadd.f32 0.0, %v1459
        %v1461 = vpop.f32.mrb[0].mxu0
        %v1462 = vpop.f32.mrb[0].mxu0
        %v1463 = vpop.f32.mrb[0].mxu0
        %1464 = vdwg.mxu0
        %1466 = vrot.lane.b32.xlu0 %v1460, 8
        %v1467 = vpop.permute.xlu0 %1466
        %vm1469 = vcmask 130112
        %1470 = vst.msk [vmem:[#allocation3] sm:$0xff] %vm1469, %v1467
        %1471 = vrot.lane.b32.xlu0 %v1242, 112
        %v1472 = vpop.permute.xlu0 %1471
        %1473 = vrot.lane.b32.xlu0 %v1242, 80
        %v1474 = vpop.permute.xlu0 %1473
        %v1476 = vsel %vm1246, %v1472, 0
        %v1479 = vsel %vm1246, %v1474, 0
        %1481 = vmatprep.subr.bf16.mxu0 0
        %1482 = vmatpush1.bf16.xpose.msra.mxu0 %v1479
        %1483 = vmatprep.subr.bf16.mxu0 0
        %1484 = vmatpush1.bf16.xpose.msra.mxu0 0
        %1485 = vmatprep.subr.bf16.mxu0 0
        %1486 = vmatpush1.bf16.xpose.msra.mxu0 0
        %1487 = vmatprep.subr.bf16.mxu0 0
        %1488 = vmatpush1.bf16.xpose.msra.mxu0 0
        %1489 = vmatprep.subr.bf16.mxu0 0
        %1490 = vmatpush1.bf16.xpose.msra.mxu0 0
        %1491 = vmatprep.subr.bf16.mxu0 0
        %1492 = vmatpush1.bf16.xpose.msra.mxu0 0
        %1493 = vmatprep.subr.bf16.mxu0 0
        %1494 = vmatpush1.bf16.xpose.msra.mxu0 0
        %1495 = vmatprep.subr.bf16.mxu0 0
        %1496 = vmatpush1.bf16.xpose.msra.mxu0 0
        %1497 = vmatprep.subr.bf16.mxu0 0
        %1498 = vmatpush1.bf16.xpose.msra.mxu0 0
        %1499 = vmatprep.subr.bf16.mxu0 0
        %1500 = vmatpush1.bf16.xpose.msra.mxu0 0
        %1501 = vmatprep.subr.bf16.mxu0 0
        %1502 = vmatpush1.bf16.xpose.msra.mxu0 0
        %1503 = vmatprep.subr.bf16.mxu0 0
        %1504 = vmatpush1.bf16.xpose.msra.mxu0 0
        %1505 = vmatprep.subr.bf16.mxu0 0
        %1506 = vmatpush1.bf16.xpose.msra.mxu0 0
        %1507 = vmatprep.subr.bf16.mxu0 0
        %1508 = vmatpush1.bf16.xpose.msra.mxu0 0
        %1509 = vmatprep.subr.bf16.mxu0 0
        %1510 = vmatpush1.bf16.xpose.msra.mxu0 0
        %1511 = vmatprep.subr.bf16.mxu0 0
        %1512 = vmatpush1.bf16.xpose.msra.mxu0 0
        %1513 = vmatprep.mubr.bf16.mxu0 0
        %1514 = vmatmul.mubr.bf16.gmra.mrb[0].mxu0 %v1476
        %v1515 = vpop.f32.mrb[0].mxu0
        %v1516 = vadd.f32 %v1172, %v1515
        %v1517 = vpop.f32.mrb[0].mxu0
        %v1518 = vpop.f32.mrb[0].mxu0
        %v1519 = vpop.f32.mrb[0].mxu0
        %1520 = vdwg.mxu0
        %v1521 = vsel %vm1246, %v1516, -inf
        %1522 = vmax.xlane.f32.xlu0 %v1521
        %v1523 = vpop.xlane.xlu0 %1522
        %v1524 = vsub.f32 %v1516, %v1523
        %v1525 = vmul.f32 %v1524, 1.442695
        %v1526 = vpow.pop %v1525
        %v1527 = vsel %vm1246, %v1526, 0.0
        %1528 = vadd.xlane.f32.xlu0 %v1527
        %v1529 = vpop.xlane.xlu0 %1528
        %v1530 = vrcp.pop %v1529
        %v1531 = vmul.f32 %v1526, %v1530
        %v1532 = vpack.c.bf16 %v1531, %v1531
        %1533 = vrot.lane.b32.xlu0 %v1242, 48
        %v1534 = vpop.permute.xlu0 %1533
        %v1536 = vsel %vm1246, %v1532, 0
        %v1539 = vsel %vm1310, %v1534, 0
        %1541 = vmatprep.subr.bf16.mxu0 0
        %1542 = vmatpush1.bf16.msra.mxu0 %v1539
        %1543 = vmatprep.subr.bf16.mxu0 0
        %1544 = vmatpush1.bf16.msra.mxu0 0
        %1545 = vmatprep.subr.bf16.mxu0 0
        %1546 = vmatpush1.bf16.msra.mxu0 0
        %1547 = vmatprep.subr.bf16.mxu0 0
        %1548 = vmatpush1.bf16.msra.mxu0 0
        %1549 = vmatprep.subr.bf16.mxu0 0
        %1550 = vmatpush1.bf16.msra.mxu0 0
        %1551 = vmatprep.subr.bf16.mxu0 0
        %1552 = vmatpush1.bf16.msra.mxu0 0
        %1553 = vmatprep.subr.bf16.mxu0 0
        %1554 = vmatpush1.bf16.msra.mxu0 0
        %1555 = vmatprep.subr.bf16.mxu0 0
        %1556 = vmatpush1.bf16.msra.mxu0 0
        %1557 = vmatprep.subr.bf16.mxu0 0
        %1558 = vmatpush1.bf16.msra.mxu0 0
        %1559 = vmatprep.subr.bf16.mxu0 0
        %1560 = vmatpush1.bf16.msra.mxu0 0
        %1561 = vmatprep.subr.bf16.mxu0 0
        %1562 = vmatpush1.bf16.msra.mxu0 0
        %1563 = vmatprep.subr.bf16.mxu0 0
        %1564 = vmatpush1.bf16.msra.mxu0 0
        %1565 = vmatprep.subr.bf16.mxu0 0
        %1566 = vmatpush1.bf16.msra.mxu0 0
        %1567 = vmatprep.subr.bf16.mxu0 0
        %1568 = vmatpush1.bf16.msra.mxu0 0
        %1569 = vmatprep.subr.bf16.mxu0 0
        %1570 = vmatpush1.bf16.msra.mxu0 0
        %1571 = vmatprep.subr.bf16.mxu0 0
        %1572 = vmatpush1.bf16.msra.mxu0 0
        %1573 = vmatprep.mubr.bf16.mxu0 0
        %1574 = vmatmul.mubr.bf16.gmra.mrb[0].mxu0 %v1536
        %v1575 = vpop.f32.mrb[0].mxu0
        %v1576 = vadd.f32 0.0, %v1575
        %v1577 = vpop.f32.mrb[0].mxu0
        %v1578 = vpop.f32.mrb[0].mxu0
        %v1579 = vpop.f32.mrb[0].mxu0
        %1580 = vdwg.mxu0
        %1582 = vrot.lane.b32.xlu0 %v1576, 16
        %v1583 = vpop.permute.xlu0 %1582
        %vm1585 = vcmask 195712
        %1586 = vst.msk [vmem:[#allocation3] sm:$0xff] %vm1585, %v1583
        %1587 = vrot.lane.b32.xlu0 %v1242, 104
        %v1588 = vpop.permute.xlu0 %1587
        %1589 = vrot.lane.b32.xlu0 %v1242, 72
        %v1590 = vpop.permute.xlu0 %1589
        %v1592 = vsel %vm1246, %v1588, 0
        %v1595 = vsel %vm1246, %v1590, 0
        %1597 = vmatprep.subr.bf16.mxu0 0
        %1598 = vmatpush1.bf16.xpose.msra.mxu0 %v1595
        %1599 = vmatprep.subr.bf16.mxu0 0
        %1600 = vmatpush1.bf16.xpose.msra.mxu0 0
        %1601 = vmatprep.subr.bf16.mxu0 0
        %1602 = vmatpush1.bf16.xpose.msra.mxu0 0
        %1603 = vmatprep.subr.bf16.mxu0 0
        %1604 = vmatpush1.bf16.xpose.msra.mxu0 0
        %1605 = vmatprep.subr.bf16.mxu0 0
        %1606 = vmatpush1.bf16.xpose.msra.mxu0 0
        %1607 = vmatprep.subr.bf16.mxu0 0
        %1608 = vmatpush1.bf16.xpose.msra.mxu0 0
        %1609 = vmatprep.subr.bf16.mxu0 0
        %1610 = vmatpush1.bf16.xpose.msra.mxu0 0
        %1611 = vmatprep.subr.bf16.mxu0 0
        %1612 = vmatpush1.bf16.xpose.msra.mxu0 0
        %1613 = vmatprep.subr.bf16.mxu0 0
        %1614 = vmatpush1.bf16.xpose.msra.mxu0 0
        %1615 = vmatprep.subr.bf16.mxu0 0
        %1616 = vmatpush1.bf16.xpose.msra.mxu0 0
        %1617 = vmatprep.subr.bf16.mxu0 0
        %1618 = vmatpush1.bf16.xpose.msra.mxu0 0
        %1619 = vmatprep.subr.bf16.mxu0 0
        %1620 = vmatpush1.bf16.xpose.msra.mxu0 0
        %1621 = vmatprep.subr.bf16.mxu0 0
        %1622 = vmatpush1.bf16.xpose.msra.mxu0 0
        %1623 = vmatprep.subr.bf16.mxu0 0
        %1624 = vmatpush1.bf16.xpose.msra.mxu0 0
        %1625 = vmatprep.subr.bf16.mxu0 0
        %1626 = vmatpush1.bf16.xpose.msra.mxu0 0
        %1627 = vmatprep.subr.bf16.mxu0 0
        %1628 = vmatpush1.bf16.xpose.msra.mxu0 0
        %1629 = vmatprep.mubr.bf16.mxu0 0
        %1630 = vmatmul.mubr.bf16.gmra.mrb[0].mxu0 %v1592
        %v1631 = vpop.f32.mrb[0].mxu0
        %v1632 = vadd.f32 %v1172, %v1631
        %v1633 = vpop.f32.mrb[0].mxu0
        %v1634 = vpop.f32.mrb[0].mxu0
        %v1635 = vpop.f32.mrb[0].mxu0
        %1636 = vdwg.mxu0
        %v1637 = vsel %vm1246, %v1632, -inf
        %1638 = vmax.xlane.f32.xlu0 %v1637
        %v1639 = vpop.xlane.xlu0 %1638
        %v1640 = vsub.f32 %v1632, %v1639
        %v1641 = vmul.f32 %v1640, 1.442695
        %v1642 = vpow.pop %v1641
        %v1643 = vsel %vm1246, %v1642, 0.0
        %1644 = vadd.xlane.f32.xlu0 %v1643
        %v1645 = vpop.xlane.xlu0 %1644
        %v1646 = vrcp.pop %v1645
        %v1647 = vmul.f32 %v1642, %v1646
        %v1648 = vpack.c.bf16 %v1647, %v1647
        %1649 = vrot.lane.b32.xlu0 %v1242, 40
        %v1650 = vpop.permute.xlu0 %1649
        %v1652 = vsel %vm1246, %v1648, 0
        %v1655 = vsel %vm1310, %v1650, 0
        %1657 = vmatprep.subr.bf16.mxu0 0
        %1658 = vmatpush1.bf16.msra.mxu0 %v1655
        %1659 = vmatprep.subr.bf16.mxu0 0
        %1660 = vmatpush1.bf16.msra.mxu0 0
        %1661 = vmatprep.subr.bf16.mxu0 0
        %1662 = vmatpush1.bf16.msra.mxu0 0
        %1663 = vmatprep.subr.bf16.mxu0 0
        %1664 = vmatpush1.bf16.msra.mxu0 0
        %1665 = vmatprep.subr.bf16.mxu0 0
        %1666 = vmatpush1.bf16.msra.mxu0 0
        %1667 = vmatprep.subr.bf16.mxu0 0
        %1668 = vmatpush1.bf16.msra.mxu0 0
        %1669 = vmatprep.subr.bf16.mxu0 0
        %1670 = vmatpush1.bf16.msra.mxu0 0
        %1671 = vmatprep.subr.bf16.mxu0 0
        %1672 = vmatpush1.bf16.msra.mxu0 0
        %1673 = vmatprep.subr.bf16.mxu0 0
        %1674 = vmatpush1.bf16.msra.mxu0 0
        %1675 = vmatprep.subr.bf16.mxu0 0
        %1676 = vmatpush1.bf16.msra.mxu0 0
        %1677 = vmatprep.subr.bf16.mxu0 0
        %1678 = vmatpush1.bf16.msra.mxu0 0
        %1679 = vmatprep.subr.bf16.mxu0 0
        %1680 = vmatpush1.bf16.msra.mxu0 0
        %1681 = vmatprep.subr.bf16.mxu0 0
        %1682 = vmatpush1.bf16.msra.mxu0 0
        %1683 = vmatprep.subr.bf16.mxu0 0
        %1684 = vmatpush1.bf16.msra.mxu0 0
        %1685 = vmatprep.subr.bf16.mxu0 0
        %1686 = vmatpush1.bf16.msra.mxu0 0
        %1687 = vmatprep.subr.bf16.mxu0 0
        %1688 = vmatpush1.bf16.msra.mxu0 0
        %1689 = vmatprep.mubr.bf16.mxu0 0
        %1690 = vmatmul.mubr.bf16.gmra.mrb[0].mxu0 %v1652
        %v1691 = vpop.f32.mrb[0].mxu0
        %v1692 = vadd.f32 0.0, %v1691
        %v1693 = vpop.f32.mrb[0].mxu0
        %v1694 = vpop.f32.mrb[0].mxu0
        %v1695 = vpop.f32.mrb[0].mxu0
        %1696 = vdwg.mxu0
        %1698 = vrot.lane.b32.xlu0 %v1692, 24
        %v1699 = vpop.permute.xlu0 %1698
        %vm1701 = vcmask 261312
        %1702 = vst.msk [vmem:[#allocation3] sm:$0xff] %vm1701, %v1699
        %v1703 = vld [vmem:[#allocation3] sm:$0xff]
        %v1704 = vld [vmem:[%s927] sm:$0xf]
        %v1705 = vld [vmem:[%s927 + $0x4] sm:$0xf]
        %v1706 = vld [vmem:[%s927 + $0x8] sm:$0xf]
        %v1707 = vld [vmem:[%s927 + $0xc] sm:$0xf]
        %v1708 = vpack.c.bf16 %v1703, %v1703
        %v1709 = vld [vmem:[%s935] sm:$0x1]
        %v1711 = vlaneseq
        %v1712 = vshrl.u32 %v1711, 7
        %v1713 = vsub.s32 0, %v1712
        %v1714 = vrot.slane %v1709, %v1713
        %v1720 = vunpack.c.l.b16 %v1704
        %v1721 = vunpack.c.l.b16 %v1705
        %v1722 = vunpack.c.l.b16 %v1706
        %v1723 = vunpack.c.l.b16 %v1707
        %v1724 = vpack.c.b16 %v1721, %v1720
        %v1725 = vpack.c.b16 %v1723, %v1722
        %v1729 = vsel %vm1198, %v1708, 0
        %1731 = vmatprep.subr.bf16.mxu0 0
        %1732 = vmatpush1.bf16.msra.mxu0 %v1724
        %1733 = vmatprep.subr.bf16.mxu0 0
        %1734 = vmatpush1.bf16.msra.mxu0 %v1725
        %1735 = vmatprep.subr.bf16.mxu0 0
        %1736 = vmatpush1.bf16.msra.mxu0 0
        %1737 = vmatprep.subr.bf16.mxu0 0
        %1738 = vmatpush1.bf16.msra.mxu0 0
        %1739 = vmatprep.subr.bf16.mxu0 0
        %1740 = vmatpush1.bf16.msra.mxu0 0
        %1741 = vmatprep.subr.bf16.mxu0 0
        %1742 = vmatpush1.bf16.msra.mxu0 0
        %1743 = vmatprep.subr.bf16.mxu0 0
        %1744 = vmatpush1.bf16.msra.mxu0 0
        %1745 = vmatprep.subr.bf16.mxu0 0
        %1746 = vmatpush1.bf16.msra.mxu0 0
        %1747 = vmatprep.subr.bf16.mxu0 0
        %1748 = vmatpush1.bf16.msra.mxu0 0
        %1749 = vmatprep.subr.bf16.mxu0 0
        %1750 = vmatpush1.bf16.msra.mxu0 0
        %1751 = vmatprep.subr.bf16.mxu0 0
        %1752 = vmatpush1.bf16.msra.mxu0 0
        %1753 = vmatprep.subr.bf16.mxu0 0
        %1754 = vmatpush1.bf16.msra.mxu0 0
        %1755 = vmatprep.subr.bf16.mxu0 0
        %1756 = vmatpush1.bf16.msra.mxu0 0
        %1757 = vmatprep.subr.bf16.mxu0 0
        %1758 = vmatpush1.bf16.msra.mxu0 0
        %1759 = vmatprep.subr.bf16.mxu0 0
        %1760 = vmatpush1.bf16.msra.mxu0 0
        %1761 = vmatprep.subr.bf16.mxu0 0
        %1762 = vmatpush1.bf16.msra.mxu0 0
        %1763 = vmatprep.mubr.bf16.mxu0 0
        %1764 = vmatmul.mubr.bf16.gmra.mrb[0].mxu0 %v1729
        %v1765 = vpop.f32.mrb[0].mxu0
        %v1766 = vadd.f32 %v1714, %v1765
        %v1767 = vpop.f32.mrb[0].mxu0
        %v1768 = vpop.f32.mrb[0].mxu0
        %v1769 = vpop.f32.mrb[0].mxu0
        %1770 = vdwg.mxu0
        %v1771 = vadd.f32 %v1766, %v1164
        %v1772 = vld [vmem:[%s943] sm:$0x1]
        %v1773 = vld [vmem:[%s951] sm:$0x1]
        %v1774 = vsel %vm1198, %v1771, 0.0
        %1775 = vadd.xlane.f32.xlu0 %v1774
        %v1776 = vpop.xlane.xlu0 %1775
        %v1777 = vrcp.pop 32.0
        %v1778 = vmul.f32 %v1776, %v1777
        %v1779 = vsub.f32 %v1771, %v1778
        %v1780 = vmul.f32 %v1779, %v1779
        %v1781 = vsel %vm1198, %v1780, 0.0
        %1782 = vadd.xlane.f32.xlu0 %v1781
        %v1783 = vpop.xlane.xlu0 %1782
        %v1784 = vmul.f32 %v1783, %v1777
        %v1785 = vadd.f32 %v1784, 1e-12
        %v1786 = vrsqrt.pop %v1785
        %v1787 = vmul.f32 %v1779, %v1786
        %v1789 = vlaneseq
        %v1790 = vshrl.u32 %v1789, 7
        %v1791 = vsub.s32 0, %v1790
        %v1792 = vrot.slane %v1772, %v1791
        %v1794 = vmul.f32 %v1792, %v1787
        %v1796 = vlaneseq
        %v1797 = vshrl.u32 %v1796, 7
        %v1798 = vsub.s32 0, %v1797
        %v1799 = vrot.slane %v1773, %v1798
        %v1801 = vadd.f32 %v1794, %v1799
        %v1802 = vld [vmem:[%s960] sm:$0xf]
        %v1803 = vld [vmem:[%s960 + $0x4] sm:$0xf]
        %v1804 = vld [vmem:[%s960 + $0x8] sm:$0xf]
        %v1805 = vld [vmem:[%s960 + $0xc] sm:$0xf]
        %v1806 = vpack.c.bf16 %v1801, %v1801
        %v1807 = vld [vmem:[%s968] sm:$0x1]
        %v1809 = vlaneseq
        %v1810 = vshrl.u32 %v1809, 7
        %v1811 = vsub.s32 0, %v1810
        %v1812 = vrot.slane %v1807, %v1811
        %v1818 = vunpack.c.l.b16 %v1802
        %v1819 = vunpack.c.l.b16 %v1803
        %v1820 = vunpack.c.l.b16 %v1804
        %v1821 = vunpack.c.l.b16 %v1805
        %v1822 = vpack.c.b16 %v1819, %v1818
        %v1823 = vpack.c.b16 %v1821, %v1820
        %v1827 = vsel %vm1198, %v1806, 0
        %1829 = vmatprep.subr.bf16.mxu0 0
        %1830 = vmatpush1.bf16.msra.mxu0 %v1822
        %1831 = vmatprep.subr.bf16.mxu0 0
        %1832 = vmatpush1.bf16.msra.mxu0 %v1823
        %1833 = vmatprep.subr.bf16.mxu0 0
        %1834 = vmatpush1.bf16.msra.mxu0 0
        %1835 = vmatprep.subr.bf16.mxu0 0
        %1836 = vmatpush1.bf16.msra.mxu0 0
        %1837 = vmatprep.subr.bf16.mxu0 0
        %1838 = vmatpush1.bf16.msra.mxu0 0
        %1839 = vmatprep.subr.bf16.mxu0 0
        %1840 = vmatpush1.bf16.msra.mxu0 0
        %1841 = vmatprep.subr.bf16.mxu0 0
        %1842 = vmatpush1.bf16.msra.mxu0 0
        %1843 = vmatprep.subr.bf16.mxu0 0
        %1844 = vmatpush1.bf16.msra.mxu0 0
        %1845 = vmatprep.subr.bf16.mxu0 0
        %1846 = vmatpush1.bf16.msra.mxu0 0
        %1847 = vmatprep.subr.bf16.mxu0 0
        %1848 = vmatpush1.bf16.msra.mxu0 0
        %1849 = vmatprep.subr.bf16.mxu0 0
        %1850 = vmatpush1.bf16.msra.mxu0 0
        %1851 = vmatprep.subr.bf16.mxu0 0
        %1852 = vmatpush1.bf16.msra.mxu0 0
        %1853 = vmatprep.subr.bf16.mxu0 0
        %1854 = vmatpush1.bf16.msra.mxu0 0
        %1855 = vmatprep.subr.bf16.mxu0 0
        %1856 = vmatpush1.bf16.msra.mxu0 0
        %1857 = vmatprep.subr.bf16.mxu0 0
        %1858 = vmatpush1.bf16.msra.mxu0 0
        %1859 = vmatprep.subr.bf16.mxu0 0
        %1860 = vmatpush1.bf16.msra.mxu0 0
        %1861 = vmatprep.mubr.bf16.mxu0 0
        %1862 = vmatmul.mubr.bf16.gmra.mrb[0].mxu0 %v1827
        %v1863 = vpop.f32.mrb[0].mxu0
        %v1864 = vadd.f32 %v1812, %v1863
        %v1865 = vpop.f32.mrb[0].mxu0
        %v1866 = vpop.f32.mrb[0].mxu0
        %v1867 = vpop.f32.mrb[0].mxu0
        %1868 = vdwg.mxu0
        %v1869 = vmul.f32 %v1864, 0.5
        %v1870 = vmul.f32 %v1864, 0.044715
        %v1871 = vmul.f32 %v1870, %v1864
        %v1872 = vmul.f32 %v1871, %v1864
        %v1873 = vadd.f32 %v1864, %v1872
        %v1874 = vmul.f32 %v1873, 0.7978846
        %v1875 = vtanh.pop %v1874
        %v1876 = vadd.f32 %v1875, 1.0
        %v1877 = vmul.f32 %v1869, %v1876
        %v1878 = vld [vmem:[%s977] sm:$0xf]
        %v1879 = vld [vmem:[%s977 + $0x4] sm:$0xf]
        %v1880 = vld [vmem:[%s977 + $0x8] sm:$0xf]
        %v1881 = vld [vmem:[%s977 + $0xc] sm:$0xf]
        %v1882 = vld [vmem:[%s977 + $0x10] sm:$0xf]
        %v1883 = vld [vmem:[%s977 + $0x14] sm:$0xf]
        %v1884 = vld [vmem:[%s977 + $0x18] sm:$0xf]
        %v1885 = vld [vmem:[%s977 + $0x1c] sm:$0xf]
        %v1886 = vpack.c.bf16 %v1877, %v1877
        %v1887 = vld [vmem:[%s985] sm:$0x1]
        %v1889 = vlaneseq
        %v1890 = vshrl.u32 %v1889, 7
        %v1891 = vsub.s32 0, %v1890
        %v1892 = vrot.slane %v1887, %v1891
        %v1902 = vunpack.c.l.b16 %v1878
        %v1903 = vunpack.c.l.b16 %v1879
        %v1904 = vunpack.c.l.b16 %v1880
        %v1905 = vunpack.c.l.b16 %v1881
        %v1906 = vunpack.c.l.b16 %v1882
        %v1907 = vunpack.c.l.b16 %v1883
        %v1908 = vunpack.c.l.b16 %v1884
        %v1909 = vunpack.c.l.b16 %v1885
        %v1910 = vpack.c.b16 %v1903, %v1902
        %v1911 = vpack.c.b16 %v1905, %v1904
        %v1912 = vpack.c.b16 %v1907, %v1906
        %v1913 = vpack.c.b16 %v1909, %v1908
        %vm1918 = vcmask 523264
        %v1920 = vsel %vm1918, %v1886, 0
        %1922 = vmatprep.subr.bf16.mxu0 0
        %1923 = vmatpush1.bf16.msra.mxu0 %v1910
        %1924 = vmatprep.subr.bf16.mxu0 0
        %1925 = vmatpush1.bf16.msra.mxu0 %v1911
        %1926 = vmatprep.subr.bf16.mxu0 0
        %1927 = vmatpush1.bf16.msra.mxu0 %v1912
        %1928 = vmatprep.subr.bf16.mxu0 0
        %1929 = vmatpush1.bf16.msra.mxu0 %v1913
        %1930 = vmatprep.subr.bf16.mxu0 0
        %1931 = vmatpush1.bf16.msra.mxu0 0
        %1932 = vmatprep.subr.bf16.mxu0 0
        %1933 = vmatpush1.bf16.msra.mxu0 0
        %1934 = vmatprep.subr.bf16.mxu0 0
        %1935 = vmatpush1.bf16.msra.mxu0 0
        %1936 = vmatprep.subr.bf16.mxu0 0
        %1937 = vmatpush1.bf16.msra.mxu0 0
        %1938 = vmatprep.subr.bf16.mxu0 0
        %1939 = vmatpush1.bf16.msra.mxu0 0
        %1940 = vmatprep.subr.bf16.mxu0 0
        %1941 = vmatpush1.bf16.msra.mxu0 0
        %1942 = vmatprep.subr.bf16.mxu0 0
        %1943 = vmatpush1.bf16.msra.mxu0 0
        %1944 = vmatprep.subr.bf16.mxu0 0
        %1945 = vmatpush1.bf16.msra.mxu0 0
        %1946 = vmatprep.subr.bf16.mxu0 0
        %1947 = vmatpush1.bf16.msra.mxu0 0
        %1948 = vmatprep.subr.bf16.mxu0 0
        %1949 = vmatpush1.bf16.msra.mxu0 0
        %1950 = vmatprep.subr.bf16.mxu0 0
        %1951 = vmatpush1.bf16.msra.mxu0 0
        %1952 = vmatprep.subr.bf16.mxu0 0
        %1953 = vmatpush1.bf16.msra.mxu0 0
        %1954 = vmatprep.mubr.bf16.mxu0 0
        %1955 = vmatmul.mubr.bf16.gmra.mrb[0].mxu0 %v1920
        %v1956 = vpop.f32.mrb[0].mxu0
        %v1957 = vadd.f32 %v1892, %v1956
        %v1958 = vpop.f32.mrb[0].mxu0
        %v1959 = vpop.f32.mrb[0].mxu0
        %v1960 = vpop.f32.mrb[0].mxu0
        %1961 = vdwg.mxu0
        %v1962 = vadd.f32 %v1957, %v1801
        %v1963 = vld [vmem:[%s993] sm:$0x1]
        %v1964 = vld [vmem:[%s1001] sm:$0x1]
        %v1965 = vsel %vm1198, %v1962, 0.0
        %1966 = vadd.xlane.f32.xlu0 %v1965
        %v1967 = vpop.xlane.xlu0 %1966
        %v1968 = vmul.f32 %v1967, %v1777
        %v1969 = vsub.f32 %v1962, %v1968
        %v1970 = vmul.f32 %v1969, %v1969
        %v1971 = vsel %vm1198, %v1970, 0.0
        %1972 = vadd.xlane.f32.xlu0 %v1971
        %v1973 = vpop.xlane.xlu0 %1972
        %v1974 = vmul.f32 %v1973, %v1777
        %v1975 = vadd.f32 %v1974, 1e-12
        %v1976 = vrsqrt.pop %v1975
        %v1977 = vmul.f32 %v1969, %v1976
        %v1979 = vlaneseq
        %v1980 = vshrl.u32 %v1979, 7
        %v1981 = vsub.s32 0, %v1980
        %v1982 = vrot.slane %v1963, %v1981
        %v1984 = vmul.f32 %v1982, %v1977
        %v1986 = vlaneseq
        %v1987 = vshrl.u32 %v1986, 7
        %v1988 = vsub.s32 0, %v1987
        %v1989 = vrot.slane %v1964, %v1988
        %v1991 = vadd.f32 %v1984, %v1989
        %1992 = vst.msk [vmem:[#allocation2] sm:$0xff] %vm1198, %v1991
        %1993 = vst.msk [vmem:[%s1117] sm:$0xff] %vm1198, %v1991
        %p1994 = scmp.eq.s32.totalorder %s50, 1
        // Predicated region
        $region169: #{bert_forward.1} parent=91 // pred_check
          %p1995 = pneg %p1994
        $region170: #{bert_forward.1} parent=91 // pred_check_branch
          %1997 = sbr.rel (%p1995) target = $region172
        $region171: #{bert_forward.1} parent=91 // pred_region
          %v1998 = vld [vmem:[#allocation24] sm:$0xf]
          %v1999 = vld [vmem:[#allocation24 + $0x4] sm:$0xf]
          %v2000 = vld [vmem:[#allocation24 + $0x8] sm:$0xf]
          %v2001 = vld [vmem:[#allocation24 + $0xc] sm:$0xf]
          %v2002 = vpack.c.bf16 %v1991, %v1991
          %v2003 = vld [vmem:[#allocation25] sm:$0x1]
          %v2008 = vunpack.c.l.b16 %v1998
          %v2009 = vunpack.c.l.b16 %v1999
          %v2010 = vunpack.c.l.b16 %v2000
          %v2011 = vunpack.c.l.b16 %v2001
          %v2012 = vpack.c.b16 %v2009, %v2008
          %v2013 = vpack.c.b16 %v2011, %v2010
          %v2017 = vsel %vm1198, %v2002, 0
          %2019 = vmatprep.subr.bf16.mxu0 0
          %2020 = vmatpush1.bf16.msra.mxu0 %v2012
          %2021 = vmatprep.subr.bf16.mxu0 0
          %2022 = vmatpush1.bf16.msra.mxu0 %v2013
          %2023 = vmatprep.subr.bf16.mxu0 0
          %2024 = vmatpush1.bf16.msra.mxu0 0
          %2025 = vmatprep.subr.bf16.mxu0 0
          %2026 = vmatpush1.bf16.msra.mxu0 0
          %2027 = vmatprep.subr.bf16.mxu0 0
          %2028 = vmatpush1.bf16.msra.mxu0 0
          %2029 = vmatprep.subr.bf16.mxu0 0
          %2030 = vmatpush1.bf16.msra.mxu0 0
          %2031 = vmatprep.subr.bf16.mxu0 0
          %2032 = vmatpush1.bf16.msra.mxu0 0
          %2033 = vmatprep.subr.bf16.mxu0 0
          %2034 = vmatpush1.bf16.msra.mxu0 0
          %2035 = vmatprep.subr.bf16.mxu0 0
          %2036 = vmatpush1.bf16.msra.mxu0 0
          %2037 = vmatprep.subr.bf16.mxu0 0
          %2038 = vmatpush1.bf16.msra.mxu0 0
          %2039 = vmatprep.subr.bf16.mxu0 0
          %2040 = vmatpush1.bf16.msra.mxu0 0
          %2041 = vmatprep.subr.bf16.mxu0 0
          %2042 = vmatpush1.bf16.msra.mxu0 0
          %2043 = vmatprep.subr.bf16.mxu0 0
          %2044 = vmatpush1.bf16.msra.mxu0 0
          %2045 = vmatprep.subr.bf16.mxu0 0
          %2046 = vmatpush1.bf16.msra.mxu0 0
          %2047 = vmatprep.subr.bf16.mxu0 0
          %2048 = vmatpush1.bf16.msra.mxu0 0
          %2049 = vmatprep.subr.bf16.mxu0 0
          %2050 = vmatpush1.bf16.msra.mxu0 0
          %2051 = vmatprep.mubr.bf16.mxu0 0
          %2052 = vmatmul.mubr.bf16.gmra.mrb[0].mxu0 %v2017
          %v2053 = vpop.f32.mrb[0].mxu0
          %v2054 = vadd.f32 %v2003, %v2053
          %v2055 = vpop.f32.mrb[0].mxu0
          %v2056 = vpop.f32.mrb[0].mxu0
          %v2057 = vpop.f32.mrb[0].mxu0
          %2058 = vdwg.mxu0
          %v2059 = vtanh.pop %v2054
          %vm2060 = vcmask 253952
          %2061 = vst.msk [vmem:[%s1123] sm:$0x1] %vm2060, %v2059
        $region172: #{bert_forward.1} parent=91 // pred_fallthru
          _
        %s2062 = sand.u32 %s515, 1
        %s2063 = scalar_lea.sflag [#allocation6], %s2062
        %s2064 = sand.u32 %s515, 1
        %s2065 = smul.addr %s2064, 8
        %s2066 = scalar_lea.vmem [#allocation27], %s2065
        %s2067 = sand.u32 %s541, 1
        %s2068 = scalar_lea.sflag [#allocation29], %s2067
        %s2069 = sand.u32 %s541, 1
        %s2070 = scalar_lea.vmem [#allocation28], %s2069
        // Predicated region
        $region173: #{bert_forward.1} parent=91 // pred_check
          %p2071 = pneg %p525
        $region174: #{bert_forward.1} parent=91 // pred_check_branch
          %2073 = sbr.rel (%p2071) target = $region176
        $region175: #{bert_forward.1} parent=91 // pred_region
          %s2075 = ssub.s32 128, 128
          %2076 = vsyncadd %s2063, %s2075
          %s2077 = smul.addr %s50, 2
          %s2078 = sadd.s32 %s49, %s2077
          %s2079 = smul.addr %s2078, 128
          %s2080 = scalar_lea.hbm %s18, %s2079
          %s2082 = sshll.u32 %s2066, 4
          %s2083 = int_to_ptr.vmem [resolvable:$true] %s2082
          %2085 = dma.vmem_to_hbm [thread:$0]  %s2083, 128, %s2080, %s2063
        $region176: #{bert_forward.1} parent=91 // pred_fallthru
          _
        // Predicated region
        $region177: #{bert_forward.1} parent=91 // pred_check
          %p2086 = pneg %p551
        $region178: #{bert_forward.1} parent=91 // pred_check_branch
          %2088 = sbr.rel (%p2086) target = $region180
        $region179: #{bert_forward.1} parent=91 // pred_region
          %s2090 = ssub.s32 16, 16
          %2091 = vsyncadd %s2068, %s2090
          %s2092 = smul.addr %s49, 16
          %s2093 = scalar_lea.hbm %s19, %s2092
          %s2095 = sshll.u32 %s2070, 4
          %s2096 = int_to_ptr.vmem [resolvable:$true] %s2095
          %2098 = dma.vmem_to_hbm [thread:$0]  %s2096, 16, %s2093, %s2068
        $region180: #{bert_forward.1} parent=91 // pred_fallthru
          _
      $region92: #{bert_forward.1} parent=5 // pred_fallthru
        _
      %p2099 = scmp.le.s32.totalorder 2, %s40
      // Predicated region
      $region181: #{bert_forward.1} parent=5 // pred_check
        %p2100 = pneg %p2099
      $region182: #{bert_forward.1} parent=5 // pred_check_branch
        %2102 = sbr.rel (%p2100) target = $region184
      $region183: #{bert_forward.1} parent=5 // pred_region
        %s2103 = ssub.s32 %s40, 2
        // Predicated region
        $region185: #{bert_forward.1} parent=183 // pred_check
          %p2104 = pneg %p531
        $region186: #{bert_forward.1} parent=183 // pred_check_branch
          %2106 = sbr.rel (%p2104) target = $region188
        $region187: #{bert_forward.1} parent=183 // pred_region
          %s2107 = sand.u32 %s516, 1
          %s2108 = scalar_lea.sflag [#allocation6], %s2107
          %s2109 = sand.u32 %s516, 1
          %s2110 = smul.addr %s2109, 8
          %s2111 = scalar_lea.vmem [#allocation27], %s2110
          %2112 = dma.done %s2108, 128
        $region188: #{bert_forward.1} parent=183 // pred_fallthru
          _
        // Predicated region
        $region189: #{bert_forward.1} parent=183 // pred_check
          %p2113 = pneg %p557
        $region190: #{bert_forward.1} parent=183 // pred_check_branch
          %2115 = sbr.rel (%p2113) target = $region192
        $region191: #{bert_forward.1} parent=183 // pred_region
          %s2116 = sand.u32 %s542, 1
          %s2117 = scalar_lea.sflag [#allocation29], %s2116
          %s2118 = sand.u32 %s542, 1
          %s2119 = scalar_lea.vmem [#allocation28], %s2118
          %2120 = dma.done %s2117, 16
        $region192: #{bert_forward.1} parent=183 // pred_fallthru
          _
      $region184: #{bert_forward.1} parent=5 // pred_fallthru
        _
    $region6: #{bert_forward.1} parent=1 // loop_footer
      %s44 = sadd.s32 1, %s40
    $region7: #{bert_forward.1} parent=1 // loop_footer_branch
      %39 = sbr.rel target = $region3
    $region8: #{bert_forward.1} parent=1 // loop_exit
      _
    %2121 = vsyncpa [#allocation5], 1
    %s2122 = scalar_lea.sflag [#allocation5], 1
    %2123 = vsyncpa %s2122, 1
    %2124 = vsyncpa [#allocation8], 1
    %s2125 = scalar_lea.sflag [#allocation8], 1
    %2126 = vsyncpa %s2125, 1
    %2127 = vsyncpa [#allocation11], 1
    %2128 = vsyncpa [#allocation26], 1
    %2129 = vsyncpa [#allocation6], 1
    %s2130 = scalar_lea.sflag [#allocation6], 1
    %2131 = vsyncpa %s2130, 1
    %2132 = vsyncpa [#allocation29], 1
    %s2133 = scalar_lea.sflag [#allocation29], 1
    %2134 = vsyncpa %s2133, 1

</llo_original>
